<compile_context>
chip_gen: v6e
topology: v6e:2x2x1
jax: 0.10.0
libtpu: 0.0.40
codegen_flags: <defaults>
</compile_context>

<pallas_src>
import functools
import math

import jax
import jax.numpy as jnp
from jax.experimental import pallas as pl
from jax.experimental.pallas import tpu as pltpu


def _round_up(x, m):
    return ((x + m - 1) // m) * m


_VMEM_BUDGET = 24 * 1024 * 1024  # < 32 MiB scoped default, << v7x 64 MiB physical


# ---------------------------------------------------------------------------
# Kernel bodies
# ---------------------------------------------------------------------------

def _dense_kernel(x_ref, w_ref, b_ref, o_ref, *, activation):
    # x_ref: (tm, K) bf16   w_ref: (K, Np) bf16   b_ref: (1, Np) f32
    acc = jnp.dot(x_ref[...], w_ref[...], preferred_element_type=jnp.float32)
    acc = acc + b_ref[...]
    if activation == "gelu":
        # TODO(synk): PyTorch's F.gelu is exact-erf; tanh approximation is used
        # here (EUP-friendly, <1e-3 difference) and mirrored in the reference.
        c = 0.7978845608028654  # sqrt(2/pi)
        acc = 0.5 * acc * (1.0 + jnp.tanh(c * (acc + 0.044715 * acc * acc * acc)))
    o_ref[...] = acc.astype(o_ref.dtype)


def _layernorm_kernel(x_ref, g_ref, b_ref, o_ref, *, eps):
    x = x_ref[...].astype(jnp.float32)
    mean = jnp.mean(x, axis=-1, keepdims=True)
    xc = x - mean
    var = jnp.mean(xc * xc, axis=-1, keepdims=True)
    inv = jax.lax.rsqrt(var + eps)
    o_ref[...] = (xc * inv * g_ref[...] + b_ref[...]).astype(o_ref.dtype)


def _attention_kernel(q_ref, k_ref, v_ref, o_ref, *, scale):
    # q/k/v_ref: (1, S, hd) f32 — one (batch, head) pair per grid step.
    # Whole sequence per step is fine for ViT (S=197); a flash-style KV-tiled
    # kernel would replace this for much longer sequences.
    q = q_ref[...]
    k = k_ref[...]
    v = v_ref[...]
    s = jnp.einsum("bqd,bkd->bqk", q, k, preferred_element_type=jnp.float32)
    s = s * scale
    m = jnp.max(s, axis=-1, keepdims=True)
    p = jnp.exp(s - m)
    p = p / jnp.sum(p, axis=-1, keepdims=True)
    out = jnp.einsum("bqk,bkd->bqd", p, v, preferred_element_type=jnp.float32)
    o_ref[...] = out.astype(o_ref.dtype)


# ---------------------------------------------------------------------------
# Pallas wrappers
# ---------------------------------------------------------------------------

def _pick_tile_m(M, K, Np, in_bytes=2, out_bytes=4):
    """Largest row tile in {512, 384, 256, 128} whose double-buffered in/out
    tiles plus the grid-invariant weight/bias fit the VMEM budget while keeping
    >= 2 grid steps (both v7x TensorCores busy).  Tiny problems use one
    sublane-aligned block."""
    if M <= 128:
        return _round_up(M, 8)
    for t in (512, 384, 256, 128):
        need = (2 * t * K * in_bytes + 2 * t * Np * out_bytes
                + K * Np * in_bytes + 4 * Np)
        if need <= _VMEM_BUDGET and M >= 2 * t:
            return t
    return 128


def pallas_dense(x, w, b, activation=None):
    """y = activation(x @ w + b).  x:(M,K), w:(K,N), b:(N,) -> (M,N) f32."""
    M, K = x.shape
    K2, N = w.shape
    assert K == K2 and b.shape == (N,)

    Np = _round_up(N, 128)          # lane-dense stores (item 4)
    tm = _pick_tile_m(M, K, Np)     # items 1/6/7/8
    Mp = _round_up(M, tm)

    xb = x.astype(jnp.bfloat16)     # item 2
    wb = w.astype(jnp.bfloat16)
    bf = b.astype(jnp.float32)
    if Mp != M:
        xb = jnp.pad(xb, ((0, Mp - M), (0, 0)))
    if Np != N:
        wb = jnp.pad(wb, ((0, 0), (0, Np - N)))
        bf = jnp.pad(bf, (0, Np - N))
    bf = bf.reshape(1, Np)

    cost = pl.CostEstimate(          # item 9
        flops=2 * M * K * N,
        transcendentals=M * N if activation == "gelu" else 0,
        bytes_accessed=Mp * K * 2 + K * Np * 2 + Np * 4 + Mp * Np * 4,
    )
    kernel = functools.partial(_dense_kernel, activation=activation)
    out = pl.pallas_call(
        kernel,
        out_shape=jax.ShapeDtypeStruct((Mp, Np), jnp.float32),
        grid_spec=pltpu.PrefetchScalarGridSpec(
            num_scalar_prefetch=0,
            grid=(Mp // tm,),
            in_specs=[
                pl.BlockSpec((tm, K), lambda i: (i, 0)),
                pl.BlockSpec((K, Np), lambda i: (0, 0)),   # grid-invariant
                pl.BlockSpec((1, Np), lambda i: (0, 0)),   # grid-invariant
            ],
            out_specs=pl.BlockSpec((tm, Np), lambda i: (i, 0)),
        ),
        compiler_params=pltpu.CompilerParams(dimension_semantics=("parallel",)),
        cost_estimate=cost,
    )(xb, wb, bf)
    return out[:M, :N]


def pallas_layernorm(x, gamma, beta, eps=1e-5):
    """Row-wise LayerNorm over the last dim.  x:(M,E) f32 -> (M,E) f32."""
    M, E = x.shape
    tm = _round_up(M, 8) if M <= 512 else 512
    Mp = _round_up(M, tm)
    xp = jnp.pad(x, ((0, Mp - M), (0, 0))) if Mp != M else x
    kernel = functools.partial(_layernorm_kernel, eps=eps)
    out = pl.pallas_call(
        kernel,
        out_shape=jax.ShapeDtypeStruct((Mp, E), jnp.float32),
        grid_spec=pltpu.PrefetchScalarGridSpec(
            num_scalar_prefetch=0,
            grid=(Mp // tm,),
            in_specs=[
                pl.BlockSpec((tm, E), lambda i: (i, 0)),
                pl.BlockSpec((1, E), lambda i: (0, 0)),
                pl.BlockSpec((1, E), lambda i: (0, 0)),
            ],
            out_specs=pl.BlockSpec((tm, E), lambda i: (i, 0)),
        ),
        compiler_params=pltpu.CompilerParams(dimension_semantics=("parallel",)),
    )(xp, gamma.reshape(1, E), beta.reshape(1, E))
    return out[:M]


def pallas_attention(q, k, v):
    """Softmax attention.  q,k,v: (B*H, S, hd) f32 -> (B*H, S, hd) f32."""
    BH, S, hd = q.shape
    kernel = functools.partial(_attention_kernel, scale=1.0 / math.sqrt(hd))
    return pl.pallas_call(
        kernel,
        out_shape=jax.ShapeDtypeStruct((BH, S, hd), jnp.float32),
        grid_spec=pltpu.PrefetchScalarGridSpec(
            num_scalar_prefetch=0,
            grid=(BH,),
            in_specs=[pl.BlockSpec((1, S, hd), lambda i: (i, 0, 0))] * 3,
            out_specs=pl.BlockSpec((1, S, hd), lambda i: (i, 0, 0)),
        ),
        compiler_params=pltpu.CompilerParams(dimension_semantics=("parallel",)),
    )(q, k, v)


# ---------------------------------------------------------------------------
# ViT forward (eval-mode semantics)
# ---------------------------------------------------------------------------

def patch_embedding(x, weight, bias, patch_size):
    """NCHW Conv2d(kernel=stride=P, pad=0) + Flatten(2,3) + permute(0,2,1)
    == dense layer over flattened non-overlapping patches.  -> (B, nh*nw, E)."""
    B, C, H, W = x.shape
    E = weight.shape[0]
    P = patch_size
    assert H % P == 0 and W % P == 0, (
        f"Could not create patches: image size ({H}x{W}) not divisible by "
        f"patch size {P}")
    nh, nw = H // P, W // P
    K = C * P * P
    # Layout pass done in bf16 (item 3: half the HBM bytes of an f32 transpose).
    xb = x.astype(jnp.bfloat16)
    patches = xb.reshape(B, C, nh, P, nw, P).transpose(0, 2, 4, 1, 3, 5)
    patches = patches.reshape(B * nh * nw, K)
    w_mat = weight.reshape(E, K).T          # contraction order (c, kh, kw)
    out = pallas_dense(patches, w_mat, bias)
    return out.reshape(B, nh * nw, E)


def _split_heads(t, B, S, H, hd):
    return t.reshape(B, S, H, hd).transpose(0, 2, 1, 3).reshape(B * H, S, hd)


def _merge_heads(t, B, S, H, hd):
    return t.reshape(B, H, S, hd).transpose(0, 2, 1, 3).reshape(B * S, H * hd)


def encoder_layer(x, p, num_heads):
    """Pre-norm transformer encoder block (norm_first=True, eval mode)."""
    B, S, E = x.shape
    hd = E // num_heads
    x2 = x.reshape(B * S, E)

    h = pallas_layernorm(x2, p["ln1_g"], p["ln1_b"])
    qkv = pallas_dense(h, p["w_qkv"], p["b_qkv"])
    q, k, v = jnp.split(qkv, 3, axis=-1)
    attn = pallas_attention(_split_heads(q, B, S, num_heads, hd),
                            _split_heads(k, B, S, num_heads, hd),
                            _split_heads(v, B, S, num_heads, hd))
    attn = _merge_heads(attn, B, S, num_heads, hd)
    x2 = x2 + pallas_dense(attn, p["w_o"], p["b_o"])

    h = pallas_layernorm(x2, p["ln2_g"], p["ln2_b"])
    h = pallas_dense(h, p["w_fc1"], p["b_fc1"], activation="gelu")
    x2 = x2 + pallas_dense(h, p["w_fc2"], p["b_fc2"])
    return x2.reshape(B, S, E)


def vit_forward(x, params, cfg):
    """ViT forward (inference).
    TODO(synk): train-mode Dropout (embedding/MSA/MLP) not implemented; all
    Dropout layers are identity here, matching module.eval() semantics."""
    B = x.shape[0]
    E, H, P = cfg["embed"], cfg["heads"], cfg["patch"]
    patches = patch_embedding(x, params["patch_w"], params["patch_b"], P)
    cls = jnp.broadcast_to(params["cls"], (B, 1, E))
    seq = jnp.concatenate([cls, patches], axis=1) + params["pos"]
    for lp in params["layers"]:
        seq = encoder_layer(seq, lp, H)
    cls_out = seq[:, 0, :]
    h = pallas_layernorm(cls_out, params["head_ln_g"], params["head_ln_b"])
    return pallas_dense(h, params["head_w"], params["head_b"])


# ---------------------------------------------------------------------------
# Parameters + pure-JAX reference (same bf16 matmul-input casts as the kernels)
# ---------------------------------------------------------------------------

def _normal(key, shape, scale=0.02):
    return scale * jax.random.normal(key, shape, dtype=jnp.float32)


def init_vit_params(key, cfg):
    E, F, L, NC = cfg["embed"], cfg["mlp"], cfg["layers"], cfg["classes"]
    C, P, S = cfg["channels"], cfg["patch"], cfg["img"]
    num_patches = (S // P) ** 2
    keys = iter(jax.random.split(key, 6 + 8 * L))
    params = {
        "patch_w": _normal(next(keys), (E, C, P, P)),
        "patch_b": _normal(next(keys), (E,)),
        "cls": jax.random.normal(next(keys), (1, 1, E), dtype=jnp.float32),
        "pos": jax.random.normal(next(keys), (1, num_patches + 1, E), dtype=jnp.float32),
        "head_ln_g": jnp.ones((E,), jnp.float32),
        "head_ln_b": jnp.zeros((E,), jnp.float32),
        "head_w": _normal(next(keys), (E, NC)),
        "head_b": _normal(next(keys), (NC,)),
        "layers": [],
    }
    for _ in range(L):
        params["layers"].append({
            "ln1_g": jnp.ones((E,), jnp.float32),
            "ln1_b": jnp.zeros((E,), jnp.float32),
            "w_qkv": _normal(next(keys), (E, 3 * E)),
            "b_qkv": _normal(next(keys), (3 * E,)),
            "w_o": _normal(next(keys), (E, E)),
            "b_o": _normal(next(keys), (E,)),
            "ln2_g": jnp.ones((E,), jnp.float32),
            "ln2_b": jnp.zeros((E,), jnp.float32),
            "w_fc1": _normal(next(keys), (E, F)),
            "b_fc1": _normal(next(keys), (F,)),
            "w_fc2": _normal(next(keys), (F, E)),
            "b_fc2": _normal(next(keys), (E,)),
        })
    return params


def _ref_dense(x, w, b, activation=None):
    y = jnp.dot(x.astype(jnp.bfloat16), w.astype(jnp.bfloat16),
                preferred_element_type=jnp.float32) + b.astype(jnp.float32)
    if activation == "gelu":
        c = 0.7978845608028654
        y = 0.5 * y * (1.0 + jnp.tanh(c * (y + 0.044715 * y * y * y)))
    return y


def _ref_layernorm(x, g, b, eps=1e-5):
    mean = jnp.mean(x, axis=-1, keepdims=True)
    xc = x - mean
    var = jnp.mean(xc * xc, axis=-1, keepdims=True)
    return xc * jax.lax.rsqrt(var + eps) * g + b


def _ref_vit(x, params, cfg):
    B, C, H, W = x.shape
    E, Hh, P = cfg["embed"], cfg["heads"], cfg["patch"]
    nh, nw = H // P, W // P
    K = C * P * P
    hd = E // Hh
    xb = x.astype(jnp.bfloat16)
    patches = xb.reshape(B, C, nh, P, nw, P).transpose(0, 2, 4, 1, 3, 5)
    patches = patches.reshape(B * nh * nw, K)
    pe = _ref_dense(patches, params["patch_w"].reshape(E, K).T,
                    params["patch_b"]).reshape(B, nh * nw, E)
    seq = jnp.concatenate([jnp.broadcast_to(params["cls"], (B, 1, E)), pe],
                          axis=1) + params["pos"]
    for p in params["layers"]:
        Bs, S, _ = seq.shape
        x2 = seq.reshape(Bs * S, E)
        h = _ref_layernorm(x2, p["ln1_g"], p["ln1_b"])
        qkv = _ref_dense(h, p["w_qkv"], p["b_qkv"])
        q, k, v = jnp.split(qkv, 3, axis=-1)
        q = _split_heads(q, Bs, S, Hh, hd)
        k = _split_heads(k, Bs, S, Hh, hd)
        v = _split_heads(v, Bs, S, Hh, hd)
        s = jnp.einsum("bqd,bkd->bqk", q, k) / math.sqrt(hd)
        a = jnp.einsum("bqk,bkd->bqd", jax.nn.softmax(s, axis=-1), v)
        a = _merge_heads(a, Bs, S, Hh, hd)
        x2 = x2 + _ref_dense(a, p["w_o"], p["b_o"])
        h = _ref_layernorm(x2, p["ln2_g"], p["ln2_b"])
        h = _ref_dense(h, p["w_fc1"], p["b_fc1"], activation="gelu")
        x2 = x2 + _ref_dense(h, p["w_fc2"], p["b_fc2"])
        seq = x2.reshape(Bs, S, E)
    cls_out = seq[:, 0, :]
    h = _ref_layernorm(cls_out, params["head_ln_g"], params["head_ln_b"])
    return _ref_dense(h, params["head_w"], params["head_b"])


# ---------------------------------------------------------------------------

if __name__ == "__main__":
    cfg = dict(img=16, channels=4, patch=4, embed=32, heads=4, mlp=64,
               layers=2, classes=16)
    B = 2

    key = jax.random.PRNGKey(0)
    kp, kx = jax.random.split(key)
    params = init_vit_params(kp, cfg)
    x = jax.random.normal(kx, (B, cfg["channels"], cfg["img"], cfg["img"]),
                          dtype=jnp.float32)

    fwd = jax.jit(lambda x_, p_: vit_forward(x_, p_, cfg))
    logits = jax.block_until_ready(fwd(x, params))
    assert logits.shape == (B, cfg["classes"]), logits.shape
    assert bool(jnp.all(jnp.isfinite(logits)))

    ref = jax.block_until_ready(jax.jit(lambda x_, p_: _ref_vit(x_, p_, cfg))(x, params))
    err = float(jnp.max(jnp.abs(logits - ref)))
    assert jnp.allclose(logits, ref, atol=1e-2, rtol=1e-2), f"max abs err {err}"
    print("KERNEL_OK")
</pallas_src>

<mosaic_0001>
module attributes {stable_mosaic.version = 11 : i64} {
  func.func @_dense_kernel(%arg0: i32, %arg1: memref<32x64xbf16, #tpu.memory_space<vmem>>, %arg2: memref<64x128xbf16, #tpu.memory_space<vmem>>, %arg3: memref<1x128xf32, #tpu.memory_space<vmem>>, %arg4: memref<32x128xf32, #tpu.memory_space<vmem>>) attributes {dimension_semantics = [#tpu.dimension_semantics<parallel>], iteration_bounds = array<i64: 1>, scalar_prefetch = 0 : i64, scratch_operands = 0 : i64, tpu.core_type = #tpu.core_type<tc>, window_params = [{transform_indices = @transform_0, window_bounds = array<i64: 32, 64>}, {pipeline_mode = #tpu.pipeline_mode<synchronous>, transform_indices = @transform_1, window_bounds = array<i64: 64, 128>}, {pipeline_mode = #tpu.pipeline_mode<synchronous>, transform_indices = @transform_2, window_bounds = array<i64: 1, 128>}, {transform_indices = @transform_3, window_bounds = array<i64: 32, 128>}]} {
    %c0 = arith.constant 0 : index
    %c0_0 = arith.constant 0 : index
    %0 = vector.load %arg1[%c0, %c0_0] : memref<32x64xbf16, #tpu.memory_space<vmem>>, vector<32x64xbf16>
    %c0_1 = arith.constant 0 : index
    %c0_2 = arith.constant 0 : index
    %1 = vector.load %arg2[%c0_1, %c0_2] : memref<64x128xbf16, #tpu.memory_space<vmem>>, vector<64x128xbf16>
    %cst = arith.constant dense<0.000000e+00> : vector<32x128xf32>
    %2 = tpu.matmul %0, %1, %cst {dimension_numbers = #tpu.dot_dimension_numbers<[1], [0], [0], [1], [0, 0, 1, 1], [], []>} : vector<32x64xbf16>, vector<64x128xbf16>, vector<32x128xf32> -> vector<32x128xf32>
    %c0_3 = arith.constant 0 : index
    %c0_4 = arith.constant 0 : index
    %3 = vector.load %arg3[%c0_3, %c0_4] : memref<1x128xf32, #tpu.memory_space<vmem>>, vector<1x128xf32>
    %4 = vector.broadcast %3 : vector<1x128xf32> to vector<32x128xf32>
    %5 = arith.addf %2, %4 : vector<32x128xf32>
    %c0_5 = arith.constant 0 : index
    %c0_6 = arith.constant 0 : index
    %6 = vector.load %arg4[%c0_5, %c0_6] : memref<32x128xf32, #tpu.memory_space<vmem>>, vector<32x128xf32>
    tpu.vector_store %arg4[%c0_5, %c0_6], %5 {strides = array<i32>} : memref<32x128xf32, #tpu.memory_space<vmem>>, vector<32x128xf32>,
    return
  }
  func.func @transform_0(%arg0: i32) -> (i32, i32) {
    %c0_i32 = arith.constant 0 : i32
    %c0_i32_0 = arith.constant 0 : i32
    return %arg0, %c0_i32 : i32, i32
  }
  func.func @transform_1(%arg0: i32) -> (i32, i32) {
    %c0_i32 = arith.constant 0 : i32
    %c0_i32_0 = arith.constant 0 : i32
    %c0_i32_1 = arith.constant 0 : i32
    return %c0_i32, %c0_i32_0 : i32, i32
  }
  func.func @transform_2(%arg0: i32) -> (i32, i32) {
    %c0_i32 = arith.constant 0 : i32
    %c0_i32_0 = arith.constant 0 : i32
    %c0_i32_1 = arith.constant 0 : i32
    return %c0_i32, %c0_i32_0 : i32, i32
  }
  func.func @transform_3(%arg0: i32) -> (i32, i32) {
    %c0_i32 = arith.constant 0 : i32
    %c0_i32_0 = arith.constant 0 : i32
    return %arg0, %c0_i32 : i32, i32
  }
}

module attributes {stable_mosaic.version = 11 : i64} {
  func.func @_layernorm_kernel(%arg0: i32, %arg1: memref<40x32xf32, #tpu.memory_space<vmem>>, %arg2: memref<1x32xf32, #tpu.memory_space<vmem>>, %arg3: memref<1x32xf32, #tpu.memory_space<vmem>>, %arg4: memref<40x32xf32, #tpu.memory_space<vmem>>) attributes {dimension_semantics = [#tpu.dimension_semantics<parallel>], iteration_bounds = array<i64: 1>, scalar_prefetch = 0 : i64, scratch_operands = 0 : i64, tpu.core_type = #tpu.core_type<tc>, window_params = [{transform_indices = @transform_0, window_bounds = array<i64: 40, 32>}, {pipeline_mode = #tpu.pipeline_mode<synchronous>, transform_indices = @transform_1, window_bounds = array<i64: 1, 32>}, {pipeline_mode = #tpu.pipeline_mode<synchronous>, transform_indices = @transform_2, window_bounds = array<i64: 1, 32>}, {transform_indices = @transform_3, window_bounds = array<i64: 40, 32>}]} {
    %c0 = arith.constant 0 : index
    %c0_0 = arith.constant 0 : index
    %0 = vector.load %arg1[%c0, %c0_0] : memref<40x32xf32, #tpu.memory_space<vmem>>, vector<40x32xf32>
    %cst = arith.constant dense<0.000000e+00> : vector<40xf32>
    %1 = vector.multi_reduction <add>, %0, %cst [1] : vector<40x32xf32> to vector<40xf32>
    %2 = vector.shape_cast %1 : vector<40xf32> to vector<40x1xf32>
    %cst_1 = arith.constant 3.200000e+01 : f32
    %3 = vector.broadcast %cst_1 : f32 to vector<40x1xf32>
    %4 = arith.divf %2, %3 : vector<40x1xf32>
    %5 = vector.broadcast %4 : vector<40x1xf32> to vector<40x32xf32>
    %6 = arith.subf %0, %5 : vector<40x32xf32>
    %7 = arith.mulf %6, %6 : vector<40x32xf32>
    %cst_2 = arith.constant dense<0.000000e+00> : vector<40xf32>
    %8 = vector.multi_reduction <add>, %7, %cst_2 [1] : vector<40x32xf32> to vector<40xf32>
    %9 = vector.shape_cast %8 : vector<40xf32> to vector<40x1xf32>
    %cst_3 = arith.constant 3.200000e+01 : f32
    %10 = vector.broadcast %cst_3 : f32 to vector<40x1xf32>
    %11 = arith.divf %9, %10 : vector<40x1xf32>
    %cst_4 = arith.constant 9.99999974E-6 : f32
    %12 = vector.broadcast %cst_4 : f32 to vector<40x1xf32>
    %13 = arith.addf %11, %12 : vector<40x1xf32>
    %14 = math.rsqrt %13 : vector<40x1xf32>
    %15 = vector.broadcast %14 : vector<40x1xf32> to vector<40x32xf32>
    %16 = arith.mulf %6, %15 : vector<40x32xf32>
    %c0_5 = arith.constant 0 : index
    %c0_6 = arith.constant 0 : index
    %17 = vector.load %arg2[%c0_5, %c0_6] : memref<1x32xf32, #tpu.memory_space<vmem>>, vector<1x32xf32>
    %18 = vector.broadcast %17 : vector<1x32xf32> to vector<40x32xf32>
    %19 = arith.mulf %16, %18 : vector<40x32xf32>
    %c0_7 = arith.constant 0 : index
    %c0_8 = arith.constant 0 : index
    %20 = vector.load %arg3[%c0_7, %c0_8] : memref<1x32xf32, #tpu.memory_space<vmem>>, vector<1x32xf32>
    %21 = vector.broadcast %20 : vector<1x32xf32> to vector<40x32xf32>
    %22 = arith.addf %19, %21 : vector<40x32xf32>
    %c0_9 = arith.constant 0 : index
    %c0_10 = arith.constant 0 : index
    %23 = vector.load %arg4[%c0_9, %c0_10] : memref<40x32xf32, #tpu.memory_space<vmem>>, vector<40x32xf32>
    tpu.vector_store %arg4[%c0_9, %c0_10], %22 {strides = array<i32>} : memref<40x32xf32, #tpu.memory_space<vmem>>, vector<40x32xf32>,
    return
  }
  func.func @transform_0(%arg0: i32) -> (i32, i32) {
    %c0_i32 = arith.constant 0 : i32
    %c0_i32_0 = arith.constant 0 : i32
    return %arg0, %c0_i32 : i32, i32
  }
  func.func @transform_1(%arg0: i32) -> (i32, i32) {
    %c0_i32 = arith.constant 0 : i32
    %c0_i32_0 = arith.constant 0 : i32
    %c0_i32_1 = arith.constant 0 : i32
    return %c0_i32, %c0_i32_0 : i32, i32
  }
  func.func @transform_2(%arg0: i32) -> (i32, i32) {
    %c0_i32 = arith.constant 0 : i32
    %c0_i32_0 = arith.constant 0 : i32
    %c0_i32_1 = arith.constant 0 : i32
    return %c0_i32, %c0_i32_0 : i32, i32
  }
  func.func @transform_3(%arg0: i32) -> (i32, i32) {
    %c0_i32 = arith.constant 0 : i32
    %c0_i32_0 = arith.constant 0 : i32
    return %arg0, %c0_i32 : i32, i32
  }
}

module attributes {stable_mosaic.version = 11 : i64} {
  func.func @_dense_kernel(%arg0: i32, %arg1: memref<40x32xbf16, #tpu.memory_space<vmem>>, %arg2: memref<32x128xbf16, #tpu.memory_space<vmem>>, %arg3: memref<1x128xf32, #tpu.memory_space<vmem>>, %arg4: memref<40x128xf32, #tpu.memory_space<vmem>>) attributes {dimension_semantics = [#tpu.dimension_semantics<parallel>], iteration_bounds = array<i64: 1>, scalar_prefetch = 0 : i64, scratch_operands = 0 : i64, tpu.core_type = #tpu.core_type<tc>, window_params = [{transform_indices = @transform_0, window_bounds = array<i64: 40, 32>}, {pipeline_mode = #tpu.pipeline_mode<synchronous>, transform_indices = @transform_1, window_bounds = array<i64: 32, 128>}, {pipeline_mode = #tpu.pipeline_mode<synchronous>, transform_indices = @transform_2, window_bounds = array<i64: 1, 128>}, {transform_indices = @transform_3, window_bounds = array<i64: 40, 128>}]} {
    %c0 = arith.constant 0 : index
    %c0_0 = arith.constant 0 : index
    %0 = vector.load %arg1[%c0, %c0_0] : memref<40x32xbf16, #tpu.memory_space<vmem>>, vector<40x32xbf16>
    %c0_1 = arith.constant 0 : index
    %c0_2 = arith.constant 0 : index
    %1 = vector.load %arg2[%c0_1, %c0_2] : memref<32x128xbf16, #tpu.memory_space<vmem>>, vector<32x128xbf16>
    %cst = arith.constant dense<0.000000e+00> : vector<40x128xf32>
    %2 = tpu.matmul %0, %1, %cst {dimension_numbers = #tpu.dot_dimension_numbers<[1], [0], [0], [1], [0, 0, 1, 1], [], []>} : vector<40x32xbf16>, vector<32x128xbf16>, vector<40x128xf32> -> vector<40x128xf32>
    %c0_3 = arith.constant 0 : index
    %c0_4 = arith.constant 0 : index
    %3 = vector.load %arg3[%c0_3, %c0_4] : memref<1x128xf32, #tpu.memory_space<vmem>>, vector<1x128xf32>
    %4 = vector.broadcast %3 : vector<1x128xf32> to vector<40x128xf32>
    %5 = arith.addf %2, %4 : vector<40x128xf32>
    %c0_5 = arith.constant 0 : index
    %c0_6 = arith.constant 0 : index
    %6 = vector.load %arg4[%c0_5, %c0_6] : memref<40x128xf32, #tpu.memory_space<vmem>>, vector<40x128xf32>
    tpu.vector_store %arg4[%c0_5, %c0_6], %5 {strides = array<i32>} : memref<40x128xf32, #tpu.memory_space<vmem>>, vector<40x128xf32>,
    return
  }
  func.func @transform_0(%arg0: i32) -> (i32, i32) {
    %c0_i32 = arith.constant 0 : i32
    %c0_i32_0 = arith.constant 0 : i32
    return %arg0, %c0_i32 : i32, i32
  }
  func.func @transform_1(%arg0: i32) -> (i32, i32) {
    %c0_i32 = arith.constant 0 : i32
    %c0_i32_0 = arith.constant 0 : i32
    %c0_i32_1 = arith.constant 0 : i32
    return %c0_i32, %c0_i32_0 : i32, i32
  }
  func.func @transform_2(%arg0: i32) -> (i32, i32) {
    %c0_i32 = arith.constant 0 : i32
    %c0_i32_0 = arith.constant 0 : i32
    %c0_i32_1 = arith.constant 0 : i32
    return %c0_i32, %c0_i32_0 : i32, i32
  }
  func.func @transform_3(%arg0: i32) -> (i32, i32) {
    %c0_i32 = arith.constant 0 : i32
    %c0_i32_0 = arith.constant 0 : i32
    return %arg0, %c0_i32 : i32, i32
  }
}

module attributes {stable_mosaic.version = 11 : i64} {
  func.func @_attention_kernel(%arg0: i32, %arg1: memref<1x17x8xf32, #tpu.memory_space<vmem>>, %arg2: memref<1x17x8xf32, #tpu.memory_space<vmem>>, %arg3: memref<1x17x8xf32, #tpu.memory_space<vmem>>, %arg4: memref<1x17x8xf32, #tpu.memory_space<vmem>>) attributes {dimension_semantics = [#tpu.dimension_semantics<parallel>], iteration_bounds = array<i64: 8>, scalar_prefetch = 0 : i64, scratch_operands = 0 : i64, tpu.core_type = #tpu.core_type<tc>, window_params = [{transform_indices = @transform_0, window_bounds = array<i64: 1, 17, 8>}, {transform_indices = @transform_1, window_bounds = array<i64: 1, 17, 8>}, {transform_indices = @transform_2, window_bounds = array<i64: 1, 17, 8>}, {transform_indices = @transform_3, window_bounds = array<i64: 1, 17, 8>}]} {
    %c0 = arith.constant 0 : index
    %c0_0 = arith.constant 0 : index
    %c0_1 = arith.constant 0 : index
    %0 = vector.load %arg1[%c0, %c0_0, %c0_1] : memref<1x17x8xf32, #tpu.memory_space<vmem>>, vector<1x17x8xf32>
    %c0_2 = arith.constant 0 : index
    %c0_3 = arith.constant 0 : index
    %c0_4 = arith.constant 0 : index
    %1 = vector.load %arg2[%c0_2, %c0_3, %c0_4] : memref<1x17x8xf32, #tpu.memory_space<vmem>>, vector<1x17x8xf32>
    %c0_5 = arith.constant 0 : index
    %c0_6 = arith.constant 0 : index
    %c0_7 = arith.constant 0 : index
    %2 = vector.load %arg3[%c0_5, %c0_6, %c0_7] : memref<1x17x8xf32, #tpu.memory_space<vmem>>, vector<1x17x8xf32>
    "tpu.trace_start"() <{level = 10 : i32, message = "bqd,bkd->bqk"}> : () -> ()
    %cst = arith.constant dense<0.000000e+00> : vector<1x17x17xf32>
    %3 = tpu.matmul %0, %1, %cst {dimension_numbers = #tpu.dot_dimension_numbers<[2], [2], [1], [1], [0, 0, 0, 1, 1, 1], [0], [0]>} : vector<1x17x8xf32>, vector<1x17x8xf32>, vector<1x17x17xf32> -> vector<1x17x17xf32>
    "tpu.trace_stop"() : () -> ()
    %cst_8 = arith.constant 0.353553385 : f32
    %4 = vector.broadcast %cst_8 : f32 to vector<1x17x17xf32>
    %5 = arith.mulf %3, %4 : vector<1x17x17xf32>
    %cst_9 = arith.constant dense<0xFF800000> : vector<1x17xf32>
    %6 = vector.multi_reduction <maximumf>, %5, %cst_9 [2] : vector<1x17x17xf32> to vector<1x17xf32>
    %7 = vector.shape_cast %6 : vector<1x17xf32> to vector<1x17x1xf32>
    %8 = vector.broadcast %7 : vector<1x17x1xf32> to vector<1x17x17xf32>
    %9 = arith.subf %5, %8 : vector<1x17x17xf32>
    %10 = math.exp %9 : vector<1x17x17xf32>
    %cst_10 = arith.constant dense<0.000000e+00> : vector<1x17xf32>
    %11 = vector.multi_reduction <add>, %10, %cst_10 [2] : vector<1x17x17xf32> to vector<1x17xf32>
    %12 = vector.shape_cast %11 : vector<1x17xf32> to vector<1x17x1xf32>
    %13 = vector.broadcast %12 : vector<1x17x1xf32> to vector<1x17x17xf32>
    %14 = arith.divf %10, %13 : vector<1x17x17xf32>
    "tpu.trace_start"() <{level = 10 : i32, message = "bqk,bkd->bqd"}> : () -> ()
    %cst_11 = arith.constant dense<0.000000e+00> : vector<1x17x8xf32>
    %15 = tpu.matmul %14, %2, %cst_11 {dimension_numbers = #tpu.dot_dimension_numbers<[2], [1], [1], [2], [0, 0, 0, 1, 1, 2], [0], [0]>} : vector<1x17x17xf32>, vector<1x17x8xf32>, vector<1x17x8xf32> -> vector<1x17x8xf32>
    "tpu.trace_stop"() : () -> ()
    %c0_12 = arith.constant 0 : index
    %c0_13 = arith.constant 0 : index
    %c0_14 = arith.constant 0 : index
    %16 = vector.load %arg4[%c0_12, %c0_13, %c0_14] : memref<1x17x8xf32, #tpu.memory_space<vmem>>, vector<1x17x8xf32>
    tpu.vector_store %arg4[%c0_12, %c0_13, %c0_14], %15 {strides = array<i32>} : memref<1x17x8xf32, #tpu.memory_space<vmem>>, vector<1x17x8xf32>,
    return
  }
  func.func @transform_0(%arg0: i32) -> (i32, i32, i32) {
    %c0_i32 = arith.constant 0 : i32
    %c0_i32_0 = arith.constant 0 : i32
    %c0_i32_1 = arith.constant 0 : i32
    return %arg0, %c0_i32, %c0_i32_0 : i32, i32, i32
  }
  func.func @transform_1(%arg0: i32) -> (i32, i32, i32) {
    %c0_i32 = arith.constant 0 : i32
    %c0_i32_0 = arith.constant 0 : i32
    %c0_i32_1 = arith.constant 0 : i32
    return %arg0, %c0_i32, %c0_i32_0 : i32, i32, i32
  }
  func.func @transform_2(%arg0: i32) -> (i32, i32, i32) {
    %c0_i32 = arith.constant 0 : i32
    %c0_i32_0 = arith.constant 0 : i32
    %c0_i32_1 = arith.constant 0 : i32
    return %arg0, %c0_i32, %c0_i32_0 : i32, i32, i32
  }
  func.func @transform_3(%arg0: i32) -> (i32, i32, i32) {
    %c0_i32 = arith.constant 0 : i32
    %c0_i32_0 = arith.constant 0 : i32
    %c0_i32_1 = arith.constant 0 : i32
    return %arg0, %c0_i32, %c0_i32_0 : i32, i32, i32
  }
}

module attributes {stable_mosaic.version = 11 : i64} {
  func.func @_dense_kernel(%arg0: i32, %arg1: memref<40x32xbf16, #tpu.memory_space<vmem>>, %arg2: memref<32x128xbf16, #tpu.memory_space<vmem>>, %arg3: memref<1x128xf32, #tpu.memory_space<vmem>>, %arg4: memref<40x128xf32, #tpu.memory_space<vmem>>) attributes {dimension_semantics = [#tpu.dimension_semantics<parallel>], iteration_bounds = array<i64: 1>, scalar_prefetch = 0 : i64, scratch_operands = 0 : i64, tpu.core_type = #tpu.core_type<tc>, window_params = [{transform_indices = @transform_0, window_bounds = array<i64: 40, 32>}, {pipeline_mode = #tpu.pipeline_mode<synchronous>, transform_indices = @transform_1, window_bounds = array<i64: 32, 128>}, {pipeline_mode = #tpu.pipeline_mode<synchronous>, transform_indices = @transform_2, window_bounds = array<i64: 1, 128>}, {transform_indices = @transform_3, window_bounds = array<i64: 40, 128>}]} {
    %c0 = arith.constant 0 : index
    %c0_0 = arith.constant 0 : index
    %0 = vector.load %arg1[%c0, %c0_0] : memref<40x32xbf16, #tpu.memory_space<vmem>>, vector<40x32xbf16>
    %c0_1 = arith.constant 0 : index
    %c0_2 = arith.constant 0 : index
    %1 = vector.load %arg2[%c0_1, %c0_2] : memref<32x128xbf16, #tpu.memory_space<vmem>>, vector<32x128xbf16>
    %cst = arith.constant dense<0.000000e+00> : vector<40x128xf32>
    %2 = tpu.matmul %0, %1, %cst {dimension_numbers = #tpu.dot_dimension_numbers<[1], [0], [0], [1], [0, 0, 1, 1], [], []>} : vector<40x32xbf16>, vector<32x128xbf16>, vector<40x128xf32> -> vector<40x128xf32>
    %c0_3 = arith.constant 0 : index
    %c0_4 = arith.constant 0 : index
    %3 = vector.load %arg3[%c0_3, %c0_4] : memref<1x128xf32, #tpu.memory_space<vmem>>, vector<1x128xf32>
    %4 = vector.broadcast %3 : vector<1x128xf32> to vector<40x128xf32>
    %5 = arith.addf %2, %4 : vector<40x128xf32>
    %c0_5 = arith.constant 0 : index
    %c0_6 = arith.constant 0 : index
    %6 = vector.load %arg4[%c0_5, %c0_6] : memref<40x128xf32, #tpu.memory_space<vmem>>, vector<40x128xf32>
    tpu.vector_store %arg4[%c0_5, %c0_6], %5 {strides = array<i32>} : memref<40x128xf32, #tpu.memory_space<vmem>>, vector<40x128xf32>,
    return
  }
  func.func @transform_0(%arg0: i32) -> (i32, i32) {
    %c0_i32 = arith.constant 0 : i32
    %c0_i32_0 = arith.constant 0 : i32
    return %arg0, %c0_i32 : i32, i32
  }
  func.func @transform_1(%arg0: i32) -> (i32, i32) {
    %c0_i32 = arith.constant 0 : i32
    %c0_i32_0 = arith.constant 0 : i32
    %c0_i32_1 = arith.constant 0 : i32
    return %c0_i32, %c0_i32_0 : i32, i32
  }
  func.func @transform_2(%arg0: i32) -> (i32, i32) {
    %c0_i32 = arith.constant 0 : i32
    %c0_i32_0 = arith.constant 0 : i32
    %c0_i32_1 = arith.constant 0 : i32
    return %c0_i32, %c0_i32_0 : i32, i32
  }
  func.func @transform_3(%arg0: i32) -> (i32, i32) {
    %c0_i32 = arith.constant 0 : i32
    %c0_i32_0 = arith.constant 0 : i32
    return %arg0, %c0_i32 : i32, i32
  }
}

module attributes {stable_mosaic.version = 11 : i64} {
  func.func @_dense_kernel(%arg0: i32, %arg1: memref<40x64xbf16, #tpu.memory_space<vmem>>, %arg2: memref<64x128xbf16, #tpu.memory_space<vmem>>, %arg3: memref<1x128xf32, #tpu.memory_space<vmem>>, %arg4: memref<40x128xf32, #tpu.memory_space<vmem>>) attributes {dimension_semantics = [#tpu.dimension_semantics<parallel>], iteration_bounds = array<i64: 1>, scalar_prefetch = 0 : i64, scratch_operands = 0 : i64, tpu.core_type = #tpu.core_type<tc>, window_params = [{transform_indices = @transform_0, window_bounds = array<i64: 40, 64>}, {pipeline_mode = #tpu.pipeline_mode<synchronous>, transform_indices = @transform_1, window_bounds = array<i64: 64, 128>}, {pipeline_mode = #tpu.pipeline_mode<synchronous>, transform_indices = @transform_2, window_bounds = array<i64: 1, 128>}, {transform_indices = @transform_3, window_bounds = array<i64: 40, 128>}]} {
    %c0 = arith.constant 0 : index
    %c0_0 = arith.constant 0 : index
    %0 = vector.load %arg1[%c0, %c0_0] : memref<40x64xbf16, #tpu.memory_space<vmem>>, vector<40x64xbf16>
    %c0_1 = arith.constant 0 : index
    %c0_2 = arith.constant 0 : index
    %1 = vector.load %arg2[%c0_1, %c0_2] : memref<64x128xbf16, #tpu.memory_space<vmem>>, vector<64x128xbf16>
    %cst = arith.constant dense<0.000000e+00> : vector<40x128xf32>
    %2 = tpu.matmul %0, %1, %cst {dimension_numbers = #tpu.dot_dimension_numbers<[1], [0], [0], [1], [0, 0, 1, 1], [], []>} : vector<40x64xbf16>, vector<64x128xbf16>, vector<40x128xf32> -> vector<40x128xf32>
    %c0_3 = arith.constant 0 : index
    %c0_4 = arith.constant 0 : index
    %3 = vector.load %arg3[%c0_3, %c0_4] : memref<1x128xf32, #tpu.memory_space<vmem>>, vector<1x128xf32>
    %4 = vector.broadcast %3 : vector<1x128xf32> to vector<40x128xf32>
    %5 = arith.addf %2, %4 : vector<40x128xf32>
    %c0_5 = arith.constant 0 : index
    %c0_6 = arith.constant 0 : index
    %6 = vector.load %arg4[%c0_5, %c0_6] : memref<40x128xf32, #tpu.memory_space<vmem>>, vector<40x128xf32>
    tpu.vector_store %arg4[%c0_5, %c0_6], %5 {strides = array<i32>} : memref<40x128xf32, #tpu.memory_space<vmem>>, vector<40x128xf32>,
    return
  }
  func.func @transform_0(%arg0: i32) -> (i32, i32) {
    %c0_i32 = arith.constant 0 : i32
    %c0_i32_0 = arith.constant 0 : i32
    return %arg0, %c0_i32 : i32, i32
  }
  func.func @transform_1(%arg0: i32) -> (i32, i32) {
    %c0_i32 = arith.constant 0 : i32
    %c0_i32_0 = arith.constant 0 : i32
    %c0_i32_1 = arith.constant 0 : i32
    return %c0_i32, %c0_i32_0 : i32, i32
  }
  func.func @transform_2(%arg0: i32) -> (i32, i32) {
    %c0_i32 = arith.constant 0 : i32
    %c0_i32_0 = arith.constant 0 : i32
    %c0_i32_1 = arith.constant 0 : i32
    return %c0_i32, %c0_i32_0 : i32, i32
  }
  func.func @transform_3(%arg0: i32) -> (i32, i32) {
    %c0_i32 = arith.constant 0 : i32
    %c0_i32_0 = arith.constant 0 : i32
    return %arg0, %c0_i32 : i32, i32
  }
}

module attributes {stable_mosaic.version = 11 : i64} {
  func.func @_layernorm_kernel(%arg0: i32, %arg1: memref<8x32xf32, #tpu.memory_space<vmem>>, %arg2: memref<1x32xf32, #tpu.memory_space<vmem>>, %arg3: memref<1x32xf32, #tpu.memory_space<vmem>>, %arg4: memref<8x32xf32, #tpu.memory_space<vmem>>) attributes {dimension_semantics = [#tpu.dimension_semantics<parallel>], iteration_bounds = array<i64: 1>, scalar_prefetch = 0 : i64, scratch_operands = 0 : i64, tpu.core_type = #tpu.core_type<tc>, window_params = [{transform_indices = @transform_0, window_bounds = array<i64: 8, 32>}, {pipeline_mode = #tpu.pipeline_mode<synchronous>, transform_indices = @transform_1, window_bounds = array<i64: 1, 32>}, {pipeline_mode = #tpu.pipeline_mode<synchronous>, transform_indices = @transform_2, window_bounds = array<i64: 1, 32>}, {transform_indices = @transform_3, window_bounds = array<i64: 8, 32>}]} {
    %c0 = arith.constant 0 : index
    %c0_0 = arith.constant 0 : index
    %0 = vector.load %arg1[%c0, %c0_0] : memref<8x32xf32, #tpu.memory_space<vmem>>, vector<8x32xf32>
    %cst = arith.constant dense<0.000000e+00> : vector<8xf32>
    %1 = vector.multi_reduction <add>, %0, %cst [1] : vector<8x32xf32> to vector<8xf32>
    %2 = vector.shape_cast %1 : vector<8xf32> to vector<8x1xf32>
    %cst_1 = arith.constant 3.200000e+01 : f32
    %3 = vector.broadcast %cst_1 : f32 to vector<8x1xf32>
    %4 = arith.divf %2, %3 : vector<8x1xf32>
    %5 = vector.broadcast %4 : vector<8x1xf32> to vector<8x32xf32>
    %6 = arith.subf %0, %5 : vector<8x32xf32>
    %7 = arith.mulf %6, %6 : vector<8x32xf32>
    %cst_2 = arith.constant dense<0.000000e+00> : vector<8xf32>
    %8 = vector.multi_reduction <add>, %7, %cst_2 [1] : vector<8x32xf32> to vector<8xf32>
    %9 = vector.shape_cast %8 : vector<8xf32> to vector<8x1xf32>
    %cst_3 = arith.constant 3.200000e+01 : f32
    %10 = vector.broadcast %cst_3 : f32 to vector<8x1xf32>
    %11 = arith.divf %9, %10 : vector<8x1xf32>
    %cst_4 = arith.constant 9.99999974E-6 : f32
    %12 = vector.broadcast %cst_4 : f32 to vector<8x1xf32>
    %13 = arith.addf %11, %12 : vector<8x1xf32>
    %14 = math.rsqrt %13 : vector<8x1xf32>
    %15 = vector.broadcast %14 : vector<8x1xf32> to vector<8x32xf32>
    %16 = arith.mulf %6, %15 : vector<8x32xf32>
    %c0_5 = arith.constant 0 : index
    %c0_6 = arith.constant 0 : index
    %17 = vector.load %arg2[%c0_5, %c0_6] : memref<1x32xf32, #tpu.memory_space<vmem>>, vector<1x32xf32>
    %18 = vector.broadcast %17 : vector<1x32xf32> to vector<8x32xf32>
    %19 = arith.mulf %16, %18 : vector<8x32xf32>
    %c0_7 = arith.constant 0 : index
    %c0_8 = arith.constant 0 : index
    %20 = vector.load %arg3[%c0_7, %c0_8] : memref<1x32xf32, #tpu.memory_space<vmem>>, vector<1x32xf32>
    %21 = vector.broadcast %20 : vector<1x32xf32> to vector<8x32xf32>
    %22 = arith.addf %19, %21 : vector<8x32xf32>
    %c0_9 = arith.constant 0 : index
    %c0_10 = arith.constant 0 : index
    %23 = vector.load %arg4[%c0_9, %c0_10] : memref<8x32xf32, #tpu.memory_space<vmem>>, vector<8x32xf32>
    tpu.vector_store %arg4[%c0_9, %c0_10], %22 {strides = array<i32>} : memref<8x32xf32, #tpu.memory_space<vmem>>, vector<8x32xf32>,
    return
  }
  func.func @transform_0(%arg0: i32) -> (i32, i32) {
    %c0_i32 = arith.constant 0 : i32
    %c0_i32_0 = arith.constant 0 : i32
    return %arg0, %c0_i32 : i32, i32
  }
  func.func @transform_1(%arg0: i32) -> (i32, i32) {
    %c0_i32 = arith.constant 0 : i32
    %c0_i32_0 = arith.constant 0 : i32
    %c0_i32_1 = arith.constant 0 : i32
    return %c0_i32, %c0_i32_0 : i32, i32
  }
  func.func @transform_2(%arg0: i32) -> (i32, i32) {
    %c0_i32 = arith.constant 0 : i32
    %c0_i32_0 = arith.constant 0 : i32
    %c0_i32_1 = arith.constant 0 : i32
    return %c0_i32, %c0_i32_0 : i32, i32
  }
  func.func @transform_3(%arg0: i32) -> (i32, i32) {
    %c0_i32 = arith.constant 0 : i32
    %c0_i32_0 = arith.constant 0 : i32
    return %arg0, %c0_i32 : i32, i32
  }
}

module attributes {stable_mosaic.version = 11 : i64} {
  func.func @_dense_kernel(%arg0: i32, %arg1: memref<40x32xbf16, #tpu.memory_space<vmem>>, %arg2: memref<32x128xbf16, #tpu.memory_space<vmem>>, %arg3: memref<1x128xf32, #tpu.memory_space<vmem>>, %arg4: memref<40x128xf32, #tpu.memory_space<vmem>>) attributes {dimension_semantics = [#tpu.dimension_semantics<parallel>], iteration_bounds = array<i64: 1>, scalar_prefetch = 0 : i64, scratch_operands = 0 : i64, tpu.core_type = #tpu.core_type<tc>, window_params = [{transform_indices = @transform_0, window_bounds = array<i64: 40, 32>}, {pipeline_mode = #tpu.pipeline_mode<synchronous>, transform_indices = @transform_1, window_bounds = array<i64: 32, 128>}, {pipeline_mode = #tpu.pipeline_mode<synchronous>, transform_indices = @transform_2, window_bounds = array<i64: 1, 128>}, {transform_indices = @transform_3, window_bounds = array<i64: 40, 128>}]} {
    %c0 = arith.constant 0 : index
    %c0_0 = arith.constant 0 : index
    %0 = vector.load %arg1[%c0, %c0_0] : memref<40x32xbf16, #tpu.memory_space<vmem>>, vector<40x32xbf16>
    %c0_1 = arith.constant 0 : index
    %c0_2 = arith.constant 0 : index
    %1 = vector.load %arg2[%c0_1, %c0_2] : memref<32x128xbf16, #tpu.memory_space<vmem>>, vector<32x128xbf16>
    %cst = arith.constant dense<0.000000e+00> : vector<40x128xf32>
    %2 = tpu.matmul %0, %1, %cst {dimension_numbers = #tpu.dot_dimension_numbers<[1], [0], [0], [1], [0, 0, 1, 1], [], []>} : vector<40x32xbf16>, vector<32x128xbf16>, vector<40x128xf32> -> vector<40x128xf32>
    %c0_3 = arith.constant 0 : index
    %c0_4 = arith.constant 0 : index
    %3 = vector.load %arg3[%c0_3, %c0_4] : memref<1x128xf32, #tpu.memory_space<vmem>>, vector<1x128xf32>
    %4 = vector.broadcast %3 : vector<1x128xf32> to vector<40x128xf32>
    %5 = arith.addf %2, %4 : vector<40x128xf32>
    %cst_5 = arith.constant 5.000000e-01 : f32
    %6 = vector.broadcast %cst_5 : f32 to vector<40x128xf32>
    %7 = arith.mulf %6, %5 : vector<40x128xf32>
    %cst_6 = arith.constant 4.471500e-02 : f32
    %8 = vector.broadcast %cst_6 : f32 to vector<40x128xf32>
    %9 = arith.mulf %8, %5 : vector<40x128xf32>
    %10 = arith.mulf %9, %5 : vector<40x128xf32>
    %11 = arith.mulf %10, %5 : vector<40x128xf32>
    %12 = arith.addf %5, %11 : vector<40x128xf32>
    %cst_7 = arith.constant 0.797884583 : f32
    %13 = vector.broadcast %cst_7 : f32 to vector<40x128xf32>
    %14 = arith.mulf %13, %12 : vector<40x128xf32>
    %15 = math.tanh %14 : vector<40x128xf32>
    %cst_8 = arith.constant 1.000000e+00 : f32
    %16 = vector.broadcast %cst_8 : f32 to vector<40x128xf32>
    %17 = arith.addf %16, %15 : vector<40x128xf32>
    %18 = arith.mulf %7, %17 : vector<40x128xf32>
    %c0_9 = arith.constant 0 : index
    %c0_10 = arith.constant 0 : index
    %19 = vector.load %arg4[%c0_9, %c0_10] : memref<40x128xf32, #tpu.memory_space<vmem>>, vector<40x128xf32>
    tpu.vector_store %arg4[%c0_9, %c0_10], %18 {strides = array<i32>} : memref<40x128xf32, #tpu.memory_space<vmem>>, vector<40x128xf32>,
    return
  }
  func.func @transform_0(%arg0: i32) -> (i32, i32) {
    %c0_i32 = arith.constant 0 : i32
    %c0_i32_0 = arith.constant 0 : i32
    return %arg0, %c0_i32 : i32, i32
  }
  func.func @transform_1(%arg0: i32) -> (i32, i32) {
    %c0_i32 = arith.constant 0 : i32
    %c0_i32_0 = arith.constant 0 : i32
    %c0_i32_1 = arith.constant 0 : i32
    return %c0_i32, %c0_i32_0 : i32, i32
  }
  func.func @transform_2(%arg0: i32) -> (i32, i32) {
    %c0_i32 = arith.constant 0 : i32
    %c0_i32_0 = arith.constant 0 : i32
    %c0_i32_1 = arith.constant 0 : i32
    return %c0_i32, %c0_i32_0 : i32, i32
  }
  func.func @transform_3(%arg0: i32) -> (i32, i32) {
    %c0_i32 = arith.constant 0 : i32
    %c0_i32_0 = arith.constant 0 : i32
    return %arg0, %c0_i32 : i32, i32
  }
}

module attributes {stable_mosaic.version = 11 : i64} {
  func.func @_dense_kernel(%arg0: i32, %arg1: memref<8x32xbf16, #tpu.memory_space<vmem>>, %arg2: memref<32x128xbf16, #tpu.memory_space<vmem>>, %arg3: memref<1x128xf32, #tpu.memory_space<vmem>>, %arg4: memref<8x128xf32, #tpu.memory_space<vmem>>) attributes {dimension_semantics = [#tpu.dimension_semantics<parallel>], iteration_bounds = array<i64: 1>, scalar_prefetch = 0 : i64, scratch_operands = 0 : i64, tpu.core_type = #tpu.core_type<tc>, window_params = [{transform_indices = @transform_0, window_bounds = array<i64: 8, 32>}, {pipeline_mode = #tpu.pipeline_mode<synchronous>, transform_indices = @transform_1, window_bounds = array<i64: 32, 128>}, {pipeline_mode = #tpu.pipeline_mode<synchronous>, transform_indices = @transform_2, window_bounds = array<i64: 1, 128>}, {transform_indices = @transform_3, window_bounds = array<i64: 8, 128>}]} {
    %c0 = arith.constant 0 : index
    %c0_0 = arith.constant 0 : index
    %0 = vector.load %arg1[%c0, %c0_0] : memref<8x32xbf16, #tpu.memory_space<vmem>>, vector<8x32xbf16>
    %c0_1 = arith.constant 0 : index
    %c0_2 = arith.constant 0 : index
    %1 = vector.load %arg2[%c0_1, %c0_2] : memref<32x128xbf16, #tpu.memory_space<vmem>>, vector<32x128xbf16>
    %cst = arith.constant dense<0.000000e+00> : vector<8x128xf32>
    %2 = tpu.matmul %0, %1, %cst {dimension_numbers = #tpu.dot_dimension_numbers<[1], [0], [0], [1], [0, 0, 1, 1], [], []>} : vector<8x32xbf16>, vector<32x128xbf16>, vector<8x128xf32> -> vector<8x128xf32>
    %c0_3 = arith.constant 0 : index
    %c0_4 = arith.constant 0 : index
    %3 = vector.load %arg3[%c0_3, %c0_4] : memref<1x128xf32, #tpu.memory_space<vmem>>, vector<1x128xf32>
    %4 = vector.broadcast %3 : vector<1x128xf32> to vector<8x128xf32>
    %5 = arith.addf %2, %4 : vector<8x128xf32>
    %c0_5 = arith.constant 0 : index
    %c0_6 = arith.constant 0 : index
    %6 = vector.load %arg4[%c0_5, %c0_6] : memref<8x128xf32, #tpu.memory_space<vmem>>, vector<8x128xf32>
    tpu.vector_store %arg4[%c0_5, %c0_6], %5 {strides = array<i32>} : memref<8x128xf32, #tpu.memory_space<vmem>>, vector<8x128xf32>,
    return
  }
  func.func @transform_0(%arg0: i32) -> (i32, i32) {
    %c0_i32 = arith.constant 0 : i32
    %c0_i32_0 = arith.constant 0 : i32
    return %arg0, %c0_i32 : i32, i32
  }
  func.func @transform_1(%arg0: i32) -> (i32, i32) {
    %c0_i32 = arith.constant 0 : i32
    %c0_i32_0 = arith.constant 0 : i32
    %c0_i32_1 = arith.constant 0 : i32
    return %c0_i32, %c0_i32_0 : i32, i32
  }
  func.func @transform_2(%arg0: i32) -> (i32, i32) {
    %c0_i32 = arith.constant 0 : i32
    %c0_i32_0 = arith.constant 0 : i32
    %c0_i32_1 = arith.constant 0 : i32
    return %c0_i32, %c0_i32_0 : i32, i32
  }
  func.func @transform_3(%arg0: i32) -> (i32, i32) {
    %c0_i32 = arith.constant 0 : i32
    %c0_i32_0 = arith.constant 0 : i32
    return %arg0, %c0_i32 : i32, i32
  }
}

</mosaic_0001>

<llo_original>
// kernel: _lambda_.18
$region0: #{_lambda_.18}
  #allocation0 [shape = 'u32[]', space=smem, size = 0x4, offset = 0x4, fixed_abs, tag = 'smem constant byte address 0x4 - core index']
  #allocation1 [shape = 'u32[144,128]{1,0:T(1,128)}', space=vmem, size = 0x12000, scoped, tag = 'internal scratch']
  %s0 = inlined_call_operand.vmem [shape: f32[40,32], index: 0, kind: input, shape index: {}]
  %s1 = inlined_call_operand.vmem [shape: f32[1,32], index: 1, kind: input, shape index: {}]
  %s2 = inlined_call_operand.vmem [shape: f32[1,32], index: 2, kind: input, shape index: {}]
  %s3 = inlined_call_operand.vmem [shape: f32[40,32], index: 3, kind: output, shape index: {}]
  %s4 = sld [smem:[#allocation0]]
  $region22: #{_lambda_.18} parent=0
    _
  %s6 = ssub.s32 1, %s4
  %s7 = scalar_select 0, %s6, %s4
  // Predicated region
  $region2: #{_lambda_.18} parent=0 // pred_check
    _
  $region3: #{_lambda_.18} parent=0 // pred_check_branch
    %9 = sbr.rel (0) target = $region5
  $region4: #{_lambda_.18} parent=0 // pred_region
    _
  $region5: #{_lambda_.18} parent=0 // pred_fallthru
    _
  // Predicated region
  $region6: #{_lambda_.18} parent=0 // pred_check
    _
  $region7: #{_lambda_.18} parent=0 // pred_check_branch
    %11 = sbr.rel (0) target = $region9
  $region8: #{_lambda_.18} parent=0 // pred_region
    _
  $region9: #{_lambda_.18} parent=0 // pred_fallthru
    _
  // Predicated region
  $region10: #{_lambda_.18} parent=0 // pred_check
    _
  $region11: #{_lambda_.18} parent=0 // pred_check_branch
    %13 = sbr.rel (0) target = $region13
  $region12: #{_lambda_.18} parent=0 // pred_region
    _
  $region13: #{_lambda_.18} parent=0 // pred_fallthru
    _
  %v14 = vld [vmem:[%s0] sm:$0xff]
  %v15 = vld [vmem:[%s0 + $0x8] sm:$0xff]
  %v16 = vld [vmem:[%s0 + $0x10] sm:$0xff]
  %v17 = vld [vmem:[%s0 + $0x18] sm:$0xff]
  %v18 = vld [vmem:[%s0 + $0x20] sm:$0xff]
  %vm19 = vcmask 261120
  %v20 = vsel %vm19, %v14, 0.0
  %21 = vadd.xlane.f32.xlu0 %v20
  %v22 = vpop.xlane.xlu0 %21
  %v23 = vsel %vm19, %v15, 0.0
  %24 = vadd.xlane.f32.xlu0 %v23
  %v25 = vpop.xlane.xlu0 %24
  %v26 = vsel %vm19, %v16, 0.0
  %27 = vadd.xlane.f32.xlu0 %v26
  %v28 = vpop.xlane.xlu0 %27
  %v29 = vsel %vm19, %v17, 0.0
  %30 = vadd.xlane.f32.xlu0 %v29
  %v31 = vpop.xlane.xlu0 %30
  %v32 = vsel %vm19, %v18, 0.0
  %33 = vadd.xlane.f32.xlu0 %v32
  %v34 = vpop.xlane.xlu0 %33
  %v35 = vrcp.pop 32.0
  %v36 = vmul.f32 %v22, %v35
  %v37 = vmul.f32 %v25, %v35
  %v38 = vmul.f32 %v28, %v35
  %v39 = vmul.f32 %v31, %v35
  %v40 = vmul.f32 %v34, %v35
  %v41 = vsub.f32 %v14, %v36
  %v42 = vsub.f32 %v15, %v37
  %v43 = vsub.f32 %v16, %v38
  %v44 = vsub.f32 %v17, %v39
  %v45 = vsub.f32 %v18, %v40
  %v46 = vmul.f32 %v41, %v41
  %v47 = vmul.f32 %v42, %v42
  %v48 = vmul.f32 %v43, %v43
  %v49 = vmul.f32 %v44, %v44
  %v50 = vmul.f32 %v45, %v45
  %v51 = vsel %vm19, %v46, 0.0
  %52 = vadd.xlane.f32.xlu0 %v51
  %v53 = vpop.xlane.xlu0 %52
  %v54 = vsel %vm19, %v47, 0.0
  %55 = vadd.xlane.f32.xlu0 %v54
  %v56 = vpop.xlane.xlu0 %55
  %v57 = vsel %vm19, %v48, 0.0
  %58 = vadd.xlane.f32.xlu0 %v57
  %v59 = vpop.xlane.xlu0 %58
  %v60 = vsel %vm19, %v49, 0.0
  %61 = vadd.xlane.f32.xlu0 %v60
  %v62 = vpop.xlane.xlu0 %61
  %v63 = vsel %vm19, %v50, 0.0
  %64 = vadd.xlane.f32.xlu0 %v63
  %v65 = vpop.xlane.xlu0 %64
  %v66 = vmul.f32 %v53, %v35
  %v67 = vmul.f32 %v56, %v35
  %v68 = vmul.f32 %v59, %v35
  %v69 = vmul.f32 %v62, %v35
  %v70 = vmul.f32 %v65, %v35
  %v71 = vadd.f32 %v66, 1e-05
  %v72 = vadd.f32 %v67, 1e-05
  %v73 = vadd.f32 %v68, 1e-05
  %v74 = vadd.f32 %v69, 1e-05
  %v75 = vadd.f32 %v70, 1e-05
  %v76 = vrsqrt.pop %v71
  %v77 = vrsqrt.pop %v72
  %v78 = vrsqrt.pop %v73
  %v79 = vrsqrt.pop %v74
  %v80 = vrsqrt.pop %v75
  %v81 = vmul.f32 %v41, %v76
  %v82 = vmul.f32 %v42, %v77
  %v83 = vmul.f32 %v43, %v78
  %v84 = vmul.f32 %v44, %v79
  %v85 = vmul.f32 %v45, %v80
  %v86 = vld [vmem:[%s1] sm:$0x1]
  %v88 = vlaneseq
  %v89 = vshrl.u32 %v88, 7
  %v90 = vsub.s32 0, %v89
  %v91 = vrot.slane %v86, %v90
  %v93 = vmul.f32 %v81, %v91
  %v94 = vmul.f32 %v82, %v91
  %v95 = vmul.f32 %v83, %v91
  %v96 = vmul.f32 %v84, %v91
  %v97 = vmul.f32 %v85, %v91
  %v98 = vld [vmem:[%s2] sm:$0x1]
  %v100 = vlaneseq
  %v101 = vshrl.u32 %v100, 7
  %v102 = vsub.s32 0, %v101
  %v103 = vrot.slane %v98, %v102
  %v105 = vadd.f32 %v93, %v103
  %v106 = vadd.f32 %v94, %v103
  %v107 = vadd.f32 %v95, %v103
  %v108 = vadd.f32 %v96, %v103
  %v109 = vadd.f32 %v97, %v103
  %110 = vst.msk [vmem:[%s3] sm:$0xff] %vm19, %v105
  %111 = vst.msk [vmem:[%s3 + $0x8] sm:$0xff] %vm19, %v106
  %112 = vst.msk [vmem:[%s3 + $0x10] sm:$0xff] %vm19, %v107
  %113 = vst.msk [vmem:[%s3 + $0x18] sm:$0xff] %vm19, %v108
  %114 = vst.msk [vmem:[%s3 + $0x20] sm:$0xff] %vm19, %v109
  // Predicated region
  $region14: #{_lambda_.18} parent=0 // pred_check
    _
  $region15: #{_lambda_.18} parent=0 // pred_check_branch
    %116 = sbr.rel (0) target = $region17
  $region16: #{_lambda_.18} parent=0 // pred_region
    _
  $region17: #{_lambda_.18} parent=0 // pred_fallthru
    _
  // Predicated region
  $region18: #{_lambda_.18} parent=0 // pred_check
    _
  $region19: #{_lambda_.18} parent=0 // pred_check_branch
    %118 = sbr.rel (0) target = $region21
  $region20: #{_lambda_.18} parent=0 // pred_region
    _
  $region21: #{_lambda_.18} parent=0 // pred_fallthru
    _

// kernel: _lambda_.17
$region0: #{_lambda_.17}
  #allocation0 [shape = 'u32[]', space=smem, size = 0x4, offset = 0x4, fixed_abs, tag = 'smem constant byte address 0x4 - core index']
  #allocation1 [shape = 'u32[144,128]{1,0:T(1,128)}', space=vmem, size = 0x12000, scoped, tag = 'internal scratch']
  %s0 = inlined_call_operand.vmem [shape: bf16[32,64], index: 0, kind: input, shape index: {}]
  %s1 = inlined_call_operand.vmem [shape: bf16[64,128], index: 1, kind: input, shape index: {}]
  %s2 = inlined_call_operand.vmem [shape: f32[1,128], index: 2, kind: input, shape index: {}]
  %s3 = inlined_call_operand.vmem [shape: f32[32,128], index: 3, kind: output, shape index: {}]
  %s4 = sld [smem:[#allocation0]]
  $region22: #{_lambda_.17} parent=0
    _
  %s6 = ssub.s32 1, %s4
  %s7 = scalar_select 0, %s6, %s4
  // Predicated region
  $region2: #{_lambda_.17} parent=0 // pred_check
    _
  $region3: #{_lambda_.17} parent=0 // pred_check_branch
    %9 = sbr.rel (0) target = $region5
  $region4: #{_lambda_.17} parent=0 // pred_region
    _
  $region5: #{_lambda_.17} parent=0 // pred_fallthru
    _
  // Predicated region
  $region6: #{_lambda_.17} parent=0 // pred_check
    _
  $region7: #{_lambda_.17} parent=0 // pred_check_branch
    %11 = sbr.rel (0) target = $region9
  $region8: #{_lambda_.17} parent=0 // pred_region
    _
  $region9: #{_lambda_.17} parent=0 // pred_fallthru
    _
  // Predicated region
  $region10: #{_lambda_.17} parent=0 // pred_check
    _
  $region11: #{_lambda_.17} parent=0 // pred_check_branch
    %13 = sbr.rel (0) target = $region13
  $region12: #{_lambda_.17} parent=0 // pred_region
    _
  $region13: #{_lambda_.17} parent=0 // pred_fallthru
    _
  %v15 = vld [vmem:[%s0] sm:$0xf]
  %v16 = vld [vmem:[%s0 + $0x4] sm:$0xf]
  %v17 = vld [vmem:[%s0 + $0x8] sm:$0xf]
  %v18 = vld [vmem:[%s0 + $0xc] sm:$0xf]
  %v19 = vld [vmem:[%s1] sm:$0xf]
  %v20 = vld [vmem:[%s1 + $0x4] sm:$0xf]
  %v21 = vld [vmem:[%s1 + $0x8] sm:$0xf]
  %v22 = vld [vmem:[%s1 + $0xc] sm:$0xf]
  %v23 = vld [vmem:[%s1 + $0x10] sm:$0xf]
  %v24 = vld [vmem:[%s1 + $0x14] sm:$0xf]
  %v25 = vld [vmem:[%s1 + $0x18] sm:$0xf]
  %v26 = vld [vmem:[%s1 + $0x1c] sm:$0xf]
  %v27 = vld [vmem:[%s2] sm:$0x1]
  %v29 = vlaneseq
  %v30 = vshrl.u32 %v29, 7
  %v31 = vsub.s32 0, %v30
  %v32 = vrot.slane %v27, %v31
  %v38 = vunpack.c.l.b16 %v15
  %v39 = vunpack.c.l.b16 %v16
  %v40 = vunpack.c.l.b16 %v17
  %v41 = vunpack.c.l.b16 %v18
  %v42 = vpack.c.b16 %v39, %v38
  %v43 = vpack.c.b16 %v41, %v40
  %v52 = vunpack.c.l.b16 %v19
  %v53 = vunpack.c.l.b16 %v20
  %v54 = vunpack.c.l.b16 %v21
  %v55 = vunpack.c.l.b16 %v22
  %v56 = vunpack.c.l.b16 %v23
  %v57 = vunpack.c.l.b16 %v24
  %v58 = vunpack.c.l.b16 %v25
  %v59 = vunpack.c.l.b16 %v26
  %v60 = vpack.c.b16 %v53, %v52
  %v61 = vpack.c.b16 %v55, %v54
  %v62 = vpack.c.b16 %v57, %v56
  %v63 = vpack.c.b16 %v59, %v58
  %vm68 = vcmask 523264
  %v70 = vsel %vm68, %v42, 0
  %v73 = vsel %vm68, %v43, 0
  %75 = vmatprep.subr.bf16.mxu0 0
  %76 = vmatpush1.bf16.msra.mxu0 0
  %77 = vmatprep.subr.bf16.mxu0 0
  %78 = vmatpush1.bf16.msra.mxu0 0
  %79 = vmatprep.subr.bf16.mxu0 0
  %80 = vmatpush1.bf16.msra.mxu0 0
  %81 = vmatprep.subr.bf16.mxu0 0
  %82 = vmatpush1.bf16.msra.mxu0 0
  %83 = vmatprep.subr.bf16.mxu0 0
  %84 = vmatpush1.bf16.msra.mxu0 %v63
  %85 = vmatprep.subr.bf16.mxu0 0
  %86 = vmatpush1.bf16.msra.mxu0 %v62
  %87 = vmatprep.subr.bf16.mxu0 0
  %88 = vmatpush1.bf16.msra.mxu0 %v61
  %89 = vmatprep.subr.bf16.mxu0 0
  %90 = vmatpush1.bf16.msra.mxu0 %v60
  %91 = vmatprep.subr.bf16.mxu0 0
  %92 = vmatpush2.bf16.msra.mxu0 0
  %93 = vmatprep.subr.bf16.mxu0 0
  %94 = vmatpush2.bf16.msra.mxu0 0
  %95 = vmatprep.subr.bf16.mxu0 0
  %96 = vmatpush2.bf16.msra.mxu0 0
  %97 = vmatprep.subr.bf16.mxu0 0
  %98 = vmatpush2.bf16.msra.mxu0 0
  %99 = vmatprep.subr.bf16.mxu0 0
  %100 = vmatpush2.bf16.msra.mxu0 0
  %101 = vmatprep.subr.bf16.mxu0 0
  %102 = vmatpush2.bf16.msra.mxu0 0
  %103 = vmatprep.subr.bf16.mxu0 0
  %104 = vmatpush2.bf16.msra.mxu0 0
  %105 = vmatprep.subr.bf16.mxu0 0
  %106 = vmatpush2.bf16.msra.mxu0 0
  %107 = vmatprep.mubr.bf16.mxu0 0
  %108 = vmatmul.mubr.bf16.gmra.mxu0 %v70
  %v109 = vpop.f32.mrf.mxu0
  %v110 = vadd.f32 %v32, %v109
  %v111 = vpop.f32.mrf.mxu0
  %v112 = vpop.f32.mrf.mxu0
  %v113 = vadd.f32 %v32, %v112
  %v114 = vpop.f32.mrf.mxu0
  %115 = vmatprep.mubr.bf16.mxu0 0
  %116 = vmatmul.mubr.bf16.gmra.mxu0 %v73
  %v117 = vpop.f32.mrf.mxu0
  %v118 = vadd.f32 %v32, %v117
  %v119 = vpop.f32.mrf.mxu0
  %v120 = vpop.f32.mrf.mxu0
  %v121 = vadd.f32 %v32, %v120
  %v122 = vpop.f32.mrf.mxu0
  %123 = vdwg.mxu0
  %124 = vst [vmem:[%s3] sm:$0xff] %v110
  %125 = vst [vmem:[%s3 + $0x8] sm:$0xff] %v113
  %126 = vst [vmem:[%s3 + $0x10] sm:$0xff] %v118
  %127 = vst [vmem:[%s3 + $0x18] sm:$0xff] %v121
  // Predicated region
  $region14: #{_lambda_.17} parent=0 // pred_check
    _
  $region15: #{_lambda_.17} parent=0 // pred_check_branch
    %129 = sbr.rel (0) target = $region17
  $region16: #{_lambda_.17} parent=0 // pred_region
    _
  $region17: #{_lambda_.17} parent=0 // pred_fallthru
    _
  // Predicated region
  $region18: #{_lambda_.17} parent=0 // pred_check
    _
  $region19: #{_lambda_.17} parent=0 // pred_check_branch
    %131 = sbr.rel (0) target = $region21
  $region20: #{_lambda_.17} parent=0 // pred_region
    _
  $region21: #{_lambda_.17} parent=0 // pred_fallthru
    _

// kernel: _lambda_.20
$region0: #{_lambda_.20}
  #allocation0 [shape = 'u32[]', space=smem, size = 0x4, offset = 0x4, fixed_abs, tag = 'smem constant byte address 0x4 - core index']
  #allocation1 [shape = 'u32[144,128]{1,0:T(1,128)}', space=vmem, size = 0x12000, scoped, tag = 'internal scratch']
  %s0 = inlined_call_operand.vmem [shape: f32[8,17,8], index: 0, kind: input, shape index: {}]
  %s1 = inlined_call_operand.vmem [shape: f32[8,17,8], index: 1, kind: input, shape index: {}]
  %s2 = inlined_call_operand.vmem [shape: f32[8,17,8], index: 2, kind: input, shape index: {}]
  %s3 = inlined_call_operand.vmem [shape: f32[8,17,8], index: 3, kind: output, shape index: {}]
  %s4 = sld [smem:[#allocation0]]
  $region45: #{_lambda_.20} parent=0
    _
  %s6 = ssub.s32 1, %s4
  %s7 = scalar_select 0, %s6, %s4
  loop: start=0, step=1, limit=10
  $region2: #{_lambda_.20} parent=0 // loop_pre_header
    _
  $region3: #{_lambda_.20} parent=0 // loop_header
    %s9 = sphi 0, %s13
    %p10 = scmp.ge.s32.totalorder %s9, 10
    %s19 = sphi 0, %s21
    %s22 = sphi 0, %s19
    %s23 = sphi 0, %s22
    %s39 = sphi 0, %s23
    %s45 = sphi 0, %s47
    %s48 = sphi 0, %s45
    %s49 = sphi 0, %s48
    %s65 = sphi 0, %s49
    %s71 = sphi 0, %s73
    %s74 = sphi 0, %s71
    %s75 = sphi 0, %s74
    %s91 = sphi 0, %s75
    %s97 = sphi 0, %s99
    %s100 = sphi 0, %s97
    %s101 = sphi 0, %s100
    %s117 = sphi 0, %s101
  $region4: #{_lambda_.20} parent=0 // loop_header_branch
    %12 = sbr.rel (%p10) target = $region8
  $region5: #{_lambda_.20} parent=0 // loop_body
    %s14 = ssub.s32 %s9, 1
    %s15 = ssub.s32 %s9, 2
    %s16 = sadd.s32 %s9, 1
    %s17 = ssub.s32 %s9, %s16
    %p18 = scmp.eq.s32.totalorder %s17, 0
    %s20 = sadd.s32 %s19, 1
    %s21 = scalar_select %p18, %s19, %s20
    %p24 = pneg %p18
    %p25 = scmp.eq.s32.totalorder %s9, 7
    %p26 = por %p24, %p25
    %p27 = scmp.ne.s32.totalorder %s19, %s22
    %p28 = scmp.eq.s32.totalorder %s9, 0
    %p29 = por %p27, %p28
    %p30 = scmp.ne.s32.totalorder %s19, %s22
    %p31 = scmp.eq.s32.totalorder %s14, 7
    %p32 = por %p30, %p31
    %p33 = scmp.ne.s32.totalorder %s22, %s23
    %p34 = scmp.eq.s32.totalorder %s14, 0
    %p35 = por %p33, %p34
    %p36 = scmp.ne.s32.totalorder %s22, %s23
    %p37 = scmp.eq.s32.totalorder %s15, 7
    %p38 = por %p36, %p37
    %p40 = scmp.ne.s32.totalorder %s23, %s39
    %p41 = scmp.eq.s32.totalorder %s15, 0
    %p42 = por %p40, %p41
    %s43 = ssub.s32 %s9, %s16
    %p44 = scmp.eq.s32.totalorder %s43, 0
    %s46 = sadd.s32 %s45, 1
    %s47 = scalar_select %p44, %s45, %s46
    %p50 = pneg %p44
    %p51 = scmp.eq.s32.totalorder %s9, 7
    %p52 = por %p50, %p51
    %p53 = scmp.ne.s32.totalorder %s45, %s48
    %p54 = scmp.eq.s32.totalorder %s9, 0
    %p55 = por %p53, %p54
    %p56 = scmp.ne.s32.totalorder %s45, %s48
    %p57 = scmp.eq.s32.totalorder %s14, 7
    %p58 = por %p56, %p57
    %p59 = scmp.ne.s32.totalorder %s48, %s49
    %p60 = scmp.eq.s32.totalorder %s14, 0
    %p61 = por %p59, %p60
    %p62 = scmp.ne.s32.totalorder %s48, %s49
    %p63 = scmp.eq.s32.totalorder %s15, 7
    %p64 = por %p62, %p63
    %p66 = scmp.ne.s32.totalorder %s49, %s65
    %p67 = scmp.eq.s32.totalorder %s15, 0
    %p68 = por %p66, %p67
    %s69 = ssub.s32 %s9, %s16
    %p70 = scmp.eq.s32.totalorder %s69, 0
    %s72 = sadd.s32 %s71, 1
    %s73 = scalar_select %p70, %s71, %s72
    %p76 = pneg %p70
    %p77 = scmp.eq.s32.totalorder %s9, 7
    %p78 = por %p76, %p77
    %p79 = scmp.ne.s32.totalorder %s71, %s74
    %p80 = scmp.eq.s32.totalorder %s9, 0
    %p81 = por %p79, %p80
    %p82 = scmp.ne.s32.totalorder %s71, %s74
    %p83 = scmp.eq.s32.totalorder %s14, 7
    %p84 = por %p82, %p83
    %p85 = scmp.ne.s32.totalorder %s74, %s75
    %p86 = scmp.eq.s32.totalorder %s14, 0
    %p87 = por %p85, %p86
    %p88 = scmp.ne.s32.totalorder %s74, %s75
    %p89 = scmp.eq.s32.totalorder %s15, 7
    %p90 = por %p88, %p89
    %p92 = scmp.ne.s32.totalorder %s75, %s91
    %p93 = scmp.eq.s32.totalorder %s15, 0
    %p94 = por %p92, %p93
    %s95 = ssub.s32 %s9, %s16
    %p96 = scmp.eq.s32.totalorder %s95, 0
    %s98 = sadd.s32 %s97, 1
    %s99 = scalar_select %p96, %s97, %s98
    %p102 = pneg %p96
    %p103 = scmp.eq.s32.totalorder %s9, 7
    %p104 = por %p102, %p103
    %p105 = scmp.ne.s32.totalorder %s97, %s100
    %p106 = scmp.eq.s32.totalorder %s9, 0
    %p107 = por %p105, %p106
    %p108 = scmp.ne.s32.totalorder %s97, %s100
    %p109 = scmp.eq.s32.totalorder %s14, 7
    %p110 = por %p108, %p109
    %p111 = scmp.ne.s32.totalorder %s100, %s101
    %p112 = scmp.eq.s32.totalorder %s14, 0
    %p113 = por %p111, %p112
    %p114 = scmp.ne.s32.totalorder %s100, %s101
    %p115 = scmp.eq.s32.totalorder %s15, 7
    %p116 = por %p114, %p115
    %p118 = scmp.ne.s32.totalorder %s101, %s117
    %p119 = scmp.eq.s32.totalorder %s15, 0
    %p120 = por %p118, %p119
    %p121 = scmp.le.s32.totalorder 1, %s9
    %p122 = scmp.lt.s32.totalorder %s9, 9
    %p123 = pnand %p121, %p122
    %p124 = pneg %p123
    // Predicated region
    $region9: #{_lambda_.20} parent=5 // pred_check
      _
    $region10: #{_lambda_.20} parent=5 // pred_check_branch
      %126 = sbr.rel (%p123) target = $region12
    $region11: #{_lambda_.20} parent=5 // pred_region
      %s127 = ssub.s32 %s9, 1
    $region12: #{_lambda_.20} parent=5 // pred_fallthru
      _
    %p128 = scmp.lt.s32.totalorder %s9, 8
    // Predicated region
    $region13: #{_lambda_.20} parent=5 // pred_check
      %p129 = pneg %p128
    $region14: #{_lambda_.20} parent=5 // pred_check_branch
      %131 = sbr.rel (%p129) target = $region16
    $region15: #{_lambda_.20} parent=5 // pred_region
      // Predicated region
      $region17: #{_lambda_.20} parent=15 // pred_check
        %p132 = pneg %p29
      $region18: #{_lambda_.20} parent=15 // pred_check_branch
        %134 = sbr.rel (%p132) target = $region20
      $region19: #{_lambda_.20} parent=15 // pred_region
        %p135 = scmp.lt.s32.totalorder %s9, 7
        %s136 = scalar_select %p135, %s9, 7
        %s137 = smul.addr %s136, 3
        %s138 = smul.addr %s137, 8
        %s139 = scalar_lea.vmem %s0, %s138
      $region20: #{_lambda_.20} parent=15 // pred_fallthru
        _
      // Predicated region
      $region21: #{_lambda_.20} parent=15 // pred_check
        %p140 = pneg %p55
      $region22: #{_lambda_.20} parent=15 // pred_check_branch
        %142 = sbr.rel (%p140) target = $region24
      $region23: #{_lambda_.20} parent=15 // pred_region
        %p143 = scmp.lt.s32.totalorder %s9, 7
        %s144 = scalar_select %p143, %s9, 7
        %s145 = smul.addr %s144, 3
        %s146 = smul.addr %s145, 8
        %s147 = scalar_lea.vmem %s1, %s146
      $region24: #{_lambda_.20} parent=15 // pred_fallthru
        _
      // Predicated region
      $region25: #{_lambda_.20} parent=15 // pred_check
        %p148 = pneg %p81
      $region26: #{_lambda_.20} parent=15 // pred_check_branch
        %150 = sbr.rel (%p148) target = $region28
      $region27: #{_lambda_.20} parent=15 // pred_region
        %p151 = scmp.lt.s32.totalorder %s9, 7
        %s152 = scalar_select %p151, %s9, 7
        %s153 = smul.addr %s152, 3
        %s154 = smul.addr %s153, 8
        %s155 = scalar_lea.vmem %s2, %s154
      $region28: #{_lambda_.20} parent=15 // pred_fallthru
        _
    $region16: #{_lambda_.20} parent=5 // pred_fallthru
      _
    %p156 = scmp.le.s32.totalorder 1, %s9
    %p157 = scmp.lt.s32.totalorder %s9, 9
    %p158 = pnand %p156, %p157
    %p159 = pneg %p158
    // Predicated region
    $region29: #{_lambda_.20} parent=5 // pred_check
      _
    $region30: #{_lambda_.20} parent=5 // pred_check_branch
      %161 = sbr.rel (%p158) target = $region32
    $region31: #{_lambda_.20} parent=5 // pred_region
      %s162 = ssub.s32 %s9, 1
      %p163 = scmp.lt.s32.totalorder %s14, 7
      %s164 = scalar_select %p163, %s14, 7
      %s165 = smul.addr %s164, 3
      %s166 = smul.addr %s165, 8
      %s167 = scalar_lea.vmem %s0, %s166
      %p168 = pneg %p35
      %p169 = pneg %p32
      %p170 = scmp.lt.s32.totalorder %s14, 7
      %s171 = scalar_select %p170, %s14, 7
      %s172 = smul.addr %s171, 3
      %s173 = smul.addr %s172, 8
      %s174 = scalar_lea.vmem %s1, %s173
      %p175 = pneg %p61
      %p176 = pneg %p58
      %p177 = scmp.lt.s32.totalorder %s14, 7
      %s178 = scalar_select %p177, %s14, 7
      %s179 = smul.addr %s178, 3
      %s180 = smul.addr %s179, 8
      %s181 = scalar_lea.vmem %s2, %s180
      %p182 = pneg %p87
      %p183 = pneg %p84
      %p184 = pneg %p113
      %p185 = pneg %p110
      %p186 = scmp.lt.s32.totalorder %s14, 7
      %s187 = scalar_select %p186, %s14, 7
      %s188 = smul.addr %s187, 3
      %s189 = smul.addr %s188, 8
      %s190 = scalar_lea.vmem %s3, %s189
      %p191 = scmp.lt.s32.totalorder %s14, 7
      %s192 = scalar_select %p191, %s14, 7
      %s193 = smul.addr %s192, 3
      %s194 = smul.addr %s193, 8
      %s195 = scalar_lea.vmem %s0, %s194
      %p196 = scmp.lt.s32.totalorder %s14, 7
      %s197 = scalar_select %p196, %s14, 7
      %s198 = smul.addr %s197, 3
      %s199 = smul.addr %s198, 8
      %s200 = scalar_lea.vmem %s1, %s199
      %p201 = scmp.lt.s32.totalorder %s14, 7
      %s202 = scalar_select %p201, %s14, 7
      %s203 = smul.addr %s202, 3
      %s204 = smul.addr %s203, 8
      %s205 = scalar_lea.vmem %s2, %s204
      %p206 = scmp.lt.s32.totalorder %s14, 7
      %s207 = scalar_select %p206, %s14, 7
      %s208 = smul.addr %s207, 3
      %s209 = smul.addr %s208, 8
      %s210 = scalar_lea.vmem %s3, %s209
      %v211 = vld [vmem:[%s195] sm:$0xff]
      %v212 = vld [vmem:[%s195 + $0x8] sm:$0xff]
      %v213 = vld [vmem:[%s195 + $0x10] sm:$0x1]
      %v214 = vld [vmem:[%s200] sm:$0xff]
      %v215 = vld [vmem:[%s200 + $0x8] sm:$0xff]
      %v216 = vld [vmem:[%s200 + $0x10] sm:$0x1]
      %v217 = vld [vmem:[%s205] sm:$0xff]
      %v218 = vld [vmem:[%s205 + $0x8] sm:$0xff]
      %v219 = vld [vmem:[%s205 + $0x10] sm:$0x1]
      %vm220 = vcmask 64512
      %v222 = vsel %vm220, %v211, 0
      %v225 = vsel %vm220, %v212, 0
      %v228 = vsel %vm220, %v213, 0
      %v231 = vsel %vm220, %v214, 0
      %v234 = vsel %vm220, %v215, 0
      %v237 = vsel %vm220, %v216, 0
      %239 = vmatprep.subr.mxu0 0.0
      %240 = vmatpush1.xpose.msra.mxu0 0.0
      %241 = vmatprep.subr.mxu0 0.0
      %242 = vmatpush1.xpose.msra.mxu0 0.0
      %243 = vmatprep.subr.mxu0 0.0
      %244 = vmatpush1.xpose.msra.mxu0 0.0
      %245 = vmatprep.subr.mxu0 0.0
      %246 = vmatpush1.xpose.msra.mxu0 0.0
      %247 = vmatprep.subr.mxu0 0.0
      %248 = vmatpush1.xpose.msra.mxu0 0.0
      %249 = vmatprep.subr.mxu0 0.0
      %250 = vmatpush1.xpose.msra.mxu0 0.0
      %251 = vmatprep.subr.mxu0 0.0
      %252 = vmatpush1.xpose.msra.mxu0 0.0
      %253 = vmatprep.subr.mxu0 0.0
      %254 = vmatpush1.xpose.msra.mxu0 0.0
      %255 = vmatprep.subr.mxu0 0.0
      %256 = vmatpush1.xpose.msra.mxu0 0.0
      %257 = vmatprep.subr.mxu0 0.0
      %258 = vmatpush1.xpose.msra.mxu0 0.0
      %259 = vmatprep.subr.mxu0 0.0
      %260 = vmatpush1.xpose.msra.mxu0 0.0
      %261 = vmatprep.subr.mxu0 0.0
      %262 = vmatpush1.xpose.msra.mxu0 0.0
      %263 = vmatprep.subr.mxu0 0.0
      %264 = vmatpush1.xpose.msra.mxu0 0.0
      %265 = vmatprep.subr.mxu0 0.0
      %266 = vmatpush1.xpose.msra.mxu0 %v237
      %267 = vmatprep.subr.mxu0 0.0
      %268 = vmatpush1.xpose.msra.mxu0 %v234
      %269 = vmatprep.subr.mxu0 0.0
      %270 = vmatpush1.xpose.msra.mxu0 %v231
      %271 = vmatprep.subr.mxu0 0.0
      %272 = vmatpush2.xpose.msra.mxu0 0.0
      %273 = vmatprep.subr.mxu0 0.0
      %274 = vmatpush2.xpose.msra.mxu0 0.0
      %275 = vmatprep.subr.mxu0 0.0
      %276 = vmatpush2.xpose.msra.mxu0 0.0
      %277 = vmatprep.subr.mxu0 0.0
      %278 = vmatpush2.xpose.msra.mxu0 0.0
      %279 = vmatprep.subr.mxu0 0.0
      %280 = vmatpush2.xpose.msra.mxu0 0.0
      %281 = vmatprep.subr.mxu0 0.0
      %282 = vmatpush2.xpose.msra.mxu0 0.0
      %283 = vmatprep.subr.mxu0 0.0
      %284 = vmatpush2.xpose.msra.mxu0 0.0
      %285 = vmatprep.subr.mxu0 0.0
      %286 = vmatpush2.xpose.msra.mxu0 0.0
      %287 = vmatprep.subr.mxu0 0.0
      %288 = vmatpush2.xpose.msra.mxu0 0.0
      %289 = vmatprep.subr.mxu0 0.0
      %290 = vmatpush2.xpose.msra.mxu0 0.0
      %291 = vmatprep.subr.mxu0 0.0
      %292 = vmatpush2.xpose.msra.mxu0 0.0
      %293 = vmatprep.subr.mxu0 0.0
      %294 = vmatpush2.xpose.msra.mxu0 0.0
      %295 = vmatprep.subr.mxu0 0.0
      %296 = vmatpush2.xpose.msra.mxu0 0.0
      %297 = vmatprep.subr.mxu0 0.0
      %298 = vmatpush2.xpose.msra.mxu0 0.0
      %299 = vmatprep.subr.mxu0 0.0
      %300 = vmatpush2.xpose.msra.mxu0 0.0
      %301 = vmatprep.subr.mxu0 0.0
      %302 = vmatpush2.xpose.msra.mxu0 0.0
      %303 = vmatprep.mubr.f32.mxu0 0.0
      %304 = vmatmul.mubr.f32.gmra.mxu0 %v222
      %v305 = vpop.f32.mrf.mxu0
      %v306 = vadd.f32 0.0, %v305
      %v307 = vpop.f32.mrf.mxu0
      %308 = vmatprep.mubr.f32.mxu0 0.0
      %309 = vmatmul.mubr.f32.gmra.mxu0 %v225
      %v310 = vpop.f32.mrf.mxu0
      %v311 = vadd.f32 0.0, %v310
      %v312 = vpop.f32.mrf.mxu0
      %313 = vmatprep.mubr.f32.mxu0 0.0
      %314 = vmatmul.mubr.f32.gmra.mxu0 %v228
      %v315 = vpop.f32.mrf.mxu0
      %v316 = vadd.f32 0.0, %v315
      %v317 = vpop.f32.mrf.mxu0
      %318 = vdwg.mxu0
      %v319 = vmul.f32 %v306, 0.35355338
      %v320 = vmul.f32 %v311, 0.35355338
      %v321 = vmul.f32 %v316, 0.35355338
      %vm322 = vcmask 138240
      %v323 = vsel %vm322, %v319, -inf
      %324 = vmax.xlane.f32.xlu0 %v323
      %v325 = vpop.xlane.xlu0 %324
      %v326 = vsel %vm322, %v320, -inf
      %327 = vmax.xlane.f32.xlu0 %v326
      %v328 = vpop.xlane.xlu0 %327
      %vm329 = vcmask 131072
      %v330 = vsel %vm329, %v321, -inf
      %331 = vmax.xlane.f32.xlu0 %v330
      %v332 = vpop.xlane.xlu0 %331
      %v333 = vsub.f32 %v319, %v325
      %v334 = vsub.f32 %v320, %v328
      %v335 = vsub.f32 %v321, %v332
      %v336 = vmul.f32 %v333, 1.442695
      %v337 = vpow.pop %v336
      %v338 = vmul.f32 %v334, 1.442695
      %v339 = vpow.pop %v338
      %v340 = vmul.f32 %v335, 1.442695
      %v341 = vpow.pop %v340
      %v342 = vsel %vm322, %v337, 0.0
      %343 = vadd.xlane.f32.xlu0 %v342
      %v344 = vpop.xlane.xlu0 %343
      %v345 = vsel %vm322, %v339, 0.0
      %346 = vadd.xlane.f32.xlu0 %v345
      %v347 = vpop.xlane.xlu0 %346
      %v348 = vsel %vm329, %v341, 0.0
      %349 = vadd.xlane.f32.xlu0 %v348
      %v350 = vpop.xlane.xlu0 %349
      %v351 = vrcp.pop %v344
      %v352 = vmul.f32 %v337, %v351
      %v353 = vrcp.pop %v347
      %v354 = vmul.f32 %v339, %v353
      %v355 = vrcp.pop %v350
      %v356 = vmul.f32 %v341, %v355
      %v358 = vsel %vm322, %v352, 0
      %v361 = vsel %vm322, %v354, 0
      %v364 = vsel %vm322, %v356, 0
      %vm366 = vcmask 1040384
      %v368 = vsel %vm366, %v219, 0
      %370 = vmatprep.subr.mxu0 0.0
      %371 = vmatpush1.msra.mxu0 0.0
      %372 = vmatprep.subr.mxu0 0.0
      %373 = vmatpush1.msra.mxu0 0.0
      %374 = vmatprep.subr.mxu0 0.0
      %375 = vmatpush1.msra.mxu0 0.0
      %376 = vmatprep.subr.mxu0 0.0
      %377 = vmatpush1.msra.mxu0 0.0
      %378 = vmatprep.subr.mxu0 0.0
      %379 = vmatpush1.msra.mxu0 0.0
      %380 = vmatprep.subr.mxu0 0.0
      %381 = vmatpush1.msra.mxu0 0.0
      %382 = vmatprep.subr.mxu0 0.0
      %383 = vmatpush1.msra.mxu0 0.0
      %384 = vmatprep.subr.mxu0 0.0
      %385 = vmatpush1.msra.mxu0 0.0
      %386 = vmatprep.subr.mxu0 0.0
      %387 = vmatpush1.msra.mxu0 0.0
      %388 = vmatprep.subr.mxu0 0.0
      %389 = vmatpush1.msra.mxu0 0.0
      %390 = vmatprep.subr.mxu0 0.0
      %391 = vmatpush1.msra.mxu0 0.0
      %392 = vmatprep.subr.mxu0 0.0
      %393 = vmatpush1.msra.mxu0 0.0
      %394 = vmatprep.subr.mxu0 0.0
      %395 = vmatpush1.msra.mxu0 0.0
      %396 = vmatprep.subr.mxu0 0.0
      %397 = vmatpush1.msra.mxu0 %v368
      %398 = vmatprep.subr.mxu0 0.0
      %399 = vmatpush1.msra.mxu0 %v218
      %400 = vmatprep.subr.mxu0 0.0
      %401 = vmatpush1.msra.mxu0 %v217
      %402 = vmatprep.subr.mxu0 0.0
      %403 = vmatpush2.msra.mxu0 0.0
      %404 = vmatprep.subr.mxu0 0.0
      %405 = vmatpush2.msra.mxu0 0.0
      %406 = vmatprep.subr.mxu0 0.0
      %407 = vmatpush2.msra.mxu0 0.0
      %408 = vmatprep.subr.mxu0 0.0
      %409 = vmatpush2.msra.mxu0 0.0
      %410 = vmatprep.subr.mxu0 0.0
      %411 = vmatpush2.msra.mxu0 0.0
      %412 = vmatprep.subr.mxu0 0.0
      %413 = vmatpush2.msra.mxu0 0.0
      %414 = vmatprep.subr.mxu0 0.0
      %415 = vmatpush2.msra.mxu0 0.0
      %416 = vmatprep.subr.mxu0 0.0
      %417 = vmatpush2.msra.mxu0 0.0
      %418 = vmatprep.subr.mxu0 0.0
      %419 = vmatpush2.msra.mxu0 0.0
      %420 = vmatprep.subr.mxu0 0.0
      %421 = vmatpush2.msra.mxu0 0.0
      %422 = vmatprep.subr.mxu0 0.0
      %423 = vmatpush2.msra.mxu0 0.0
      %424 = vmatprep.subr.mxu0 0.0
      %425 = vmatpush2.msra.mxu0 0.0
      %426 = vmatprep.subr.mxu0 0.0
      %427 = vmatpush2.msra.mxu0 0.0
      %428 = vmatprep.subr.mxu0 0.0
      %429 = vmatpush2.msra.mxu0 0.0
      %430 = vmatprep.subr.mxu0 0.0
      %431 = vmatpush2.msra.mxu0 0.0
      %432 = vmatprep.subr.mxu0 0.0
      %433 = vmatpush2.msra.mxu0 0.0
      %434 = vmatprep.mubr.f32.mxu0 0.0
      %435 = vmatmul.mubr.f32.gmra.mxu0 %v358
      %v436 = vpop.f32.mrf.mxu0
      %v437 = vadd.f32 0.0, %v436
      %v438 = vpop.f32.mrf.mxu0
      %439 = vmatprep.mubr.f32.mxu0 0.0
      %440 = vmatmul.mubr.f32.gmra.mxu0 %v361
      %v441 = vpop.f32.mrf.mxu0
      %v442 = vadd.f32 0.0, %v441
      %v443 = vpop.f32.mrf.mxu0
      %444 = vmatprep.mubr.f32.mxu0 0.0
      %445 = vmatmul.mubr.f32.gmra.mxu0 %v364
      %v446 = vpop.f32.mrf.mxu0
      %v447 = vadd.f32 0.0, %v446
      %v448 = vpop.f32.mrf.mxu0
      %449 = vdwg.mxu0
      %450 = vst.msk [vmem:[%s210] sm:$0xff] %vm220, %v437
      %451 = vst.msk [vmem:[%s210 + $0x8] sm:$0xff] %vm220, %v442
      %vm452 = vcmask 57344
      %453 = vst.msk [vmem:[%s210 + $0x10] sm:$0x1] %vm452, %v447
      %p454 = scmp.lt.s32.totalorder %s14, 7
      %s455 = scalar_select %p454, %s14, 7
      %s456 = smul.addr %s455, 3
      %s457 = smul.addr %s456, 8
      %s458 = scalar_lea.vmem %s3, %s457
      // Predicated region
      $region33: #{_lambda_.20} parent=31 // pred_check
        %p459 = pneg %p110
      $region34: #{_lambda_.20} parent=31 // pred_check_branch
        %461 = sbr.rel (%p459) target = $region36
      $region35: #{_lambda_.20} parent=31 // pred_region
        _
      $region36: #{_lambda_.20} parent=31 // pred_fallthru
        _
    $region32: #{_lambda_.20} parent=5 // pred_fallthru
      _
    %p462 = scmp.le.s32.totalorder 2, %s9
    // Predicated region
    $region37: #{_lambda_.20} parent=5 // pred_check
      %p463 = pneg %p462
    $region38: #{_lambda_.20} parent=5 // pred_check_branch
      %465 = sbr.rel (%p463) target = $region40
    $region39: #{_lambda_.20} parent=5 // pred_region
      %s466 = ssub.s32 %s9, 2
      // Predicated region
      $region41: #{_lambda_.20} parent=39 // pred_check
        %p467 = pneg %p116
      $region42: #{_lambda_.20} parent=39 // pred_check_branch
        %469 = sbr.rel (%p467) target = $region44
      $region43: #{_lambda_.20} parent=39 // pred_region
        %p470 = scmp.lt.s32.totalorder %s15, 7
        %s471 = scalar_select %p470, %s15, 7
        %s472 = smul.addr %s471, 3
        %s473 = smul.addr %s472, 8
        %s474 = scalar_lea.vmem %s3, %s473
      $region44: #{_lambda_.20} parent=39 // pred_fallthru
        _
    $region40: #{_lambda_.20} parent=5 // pred_fallthru
      _
  $region6: #{_lambda_.20} parent=0 // loop_footer
    %s13 = sadd.s32 1, %s9
  $region7: #{_lambda_.20} parent=0 // loop_footer_branch
    %8 = sbr.rel target = $region3
  $region8: #{_lambda_.20} parent=0 // loop_exit
    _

// kernel: _lambda_.19
$region0: #{_lambda_.19}
  #allocation0 [shape = 'u32[]', space=smem, size = 0x4, offset = 0x4, fixed_abs, tag = 'smem constant byte address 0x4 - core index']
  #allocation1 [shape = 'u32[144,128]{1,0:T(1,128)}', space=vmem, size = 0x12000, scoped, tag = 'internal scratch']
  %s0 = inlined_call_operand.vmem [shape: bf16[40,32], index: 0, kind: input, shape index: {}]
  %s1 = inlined_call_operand.vmem [shape: bf16[32,128], index: 1, kind: input, shape index: {}]
  %s2 = inlined_call_operand.vmem [shape: f32[1,128], index: 2, kind: input, shape index: {}]
  %s3 = inlined_call_operand.vmem [shape: f32[40,128], index: 3, kind: output, shape index: {}]
  %s4 = sld [smem:[#allocation0]]
  $region22: #{_lambda_.19} parent=0
    _
  %s6 = ssub.s32 1, %s4
  %s7 = scalar_select 0, %s6, %s4
  // Predicated region
  $region2: #{_lambda_.19} parent=0 // pred_check
    _
  $region3: #{_lambda_.19} parent=0 // pred_check_branch
    %9 = sbr.rel (0) target = $region5
  $region4: #{_lambda_.19} parent=0 // pred_region
    _
  $region5: #{_lambda_.19} parent=0 // pred_fallthru
    _
  // Predicated region
  $region6: #{_lambda_.19} parent=0 // pred_check
    _
  $region7: #{_lambda_.19} parent=0 // pred_check_branch
    %11 = sbr.rel (0) target = $region9
  $region8: #{_lambda_.19} parent=0 // pred_region
    _
  $region9: #{_lambda_.19} parent=0 // pred_fallthru
    _
  // Predicated region
  $region10: #{_lambda_.19} parent=0 // pred_check
    _
  $region11: #{_lambda_.19} parent=0 // pred_check_branch
    %13 = sbr.rel (0) target = $region13
  $region12: #{_lambda_.19} parent=0 // pred_region
    _
  $region13: #{_lambda_.19} parent=0 // pred_fallthru
    _
  %v15 = vld [vmem:[%s0] sm:$0xf]
  %v16 = vld [vmem:[%s0 + $0x4] sm:$0xf]
  %v17 = vld [vmem:[%s0 + $0x8] sm:$0xf]
  %v18 = vld [vmem:[%s0 + $0xc] sm:$0xf]
  %v19 = vld [vmem:[%s0 + $0x10] sm:$0xf]
  %v20 = vld [vmem:[%s1] sm:$0xf]
  %v21 = vld [vmem:[%s1 + $0x4] sm:$0xf]
  %v22 = vld [vmem:[%s1 + $0x8] sm:$0xf]
  %v23 = vld [vmem:[%s1 + $0xc] sm:$0xf]
  %v24 = vld [vmem:[%s2] sm:$0x1]
  %v26 = vlaneseq
  %v27 = vshrl.u32 %v26, 7
  %v28 = vsub.s32 0, %v27
  %v29 = vrot.slane %v24, %v28
  %v36 = vunpack.c.l.b16 %v15
  %v37 = vunpack.c.l.b16 %v16
  %v38 = vunpack.c.l.b16 %v17
  %v39 = vunpack.c.l.b16 %v18
  %v40 = vunpack.c.l.b16 %v19
  %v41 = vpack.c.b16 %v37, %v36
  %v42 = vpack.c.b16 %v39, %v38
  %v43 = vpack.c.b16 %v40, %v40
  %v48 = vunpack.c.l.b16 %v20
  %v49 = vunpack.c.l.b16 %v21
  %v50 = vunpack.c.l.b16 %v22
  %v51 = vunpack.c.l.b16 %v23
  %v52 = vpack.c.b16 %v49, %v48
  %v53 = vpack.c.b16 %v51, %v50
  %vm56 = vcmask 261120
  %v58 = vsel %vm56, %v41, 0
  %v61 = vsel %vm56, %v42, 0
  %v64 = vsel %vm56, %v43, 0
  %66 = vmatprep.subr.bf16.mxu0 0
  %67 = vmatpush1.bf16.msra.mxu0 0
  %68 = vmatprep.subr.bf16.mxu0 0
  %69 = vmatpush1.bf16.msra.mxu0 0
  %70 = vmatprep.subr.bf16.mxu0 0
  %71 = vmatpush1.bf16.msra.mxu0 0
  %72 = vmatprep.subr.bf16.mxu0 0
  %73 = vmatpush1.bf16.msra.mxu0 0
  %74 = vmatprep.subr.bf16.mxu0 0
  %75 = vmatpush1.bf16.msra.mxu0 0
  %76 = vmatprep.subr.bf16.mxu0 0
  %77 = vmatpush1.bf16.msra.mxu0 0
  %78 = vmatprep.subr.bf16.mxu0 0
  %79 = vmatpush1.bf16.msra.mxu0 %v53
  %80 = vmatprep.subr.bf16.mxu0 0
  %81 = vmatpush1.bf16.msra.mxu0 %v52
  %82 = vmatprep.subr.bf16.mxu0 0
  %83 = vmatpush2.bf16.msra.mxu0 0
  %84 = vmatprep.subr.bf16.mxu0 0
  %85 = vmatpush2.bf16.msra.mxu0 0
  %86 = vmatprep.subr.bf16.mxu0 0
  %87 = vmatpush2.bf16.msra.mxu0 0
  %88 = vmatprep.subr.bf16.mxu0 0
  %89 = vmatpush2.bf16.msra.mxu0 0
  %90 = vmatprep.subr.bf16.mxu0 0
  %91 = vmatpush2.bf16.msra.mxu0 0
  %92 = vmatprep.subr.bf16.mxu0 0
  %93 = vmatpush2.bf16.msra.mxu0 0
  %94 = vmatprep.subr.bf16.mxu0 0
  %95 = vmatpush2.bf16.msra.mxu0 0
  %96 = vmatprep.subr.bf16.mxu0 0
  %97 = vmatpush2.bf16.msra.mxu0 0
  %98 = vmatprep.mubr.bf16.mxu0 0
  %99 = vmatmul.mubr.bf16.gmra.mxu0 %v58
  %v100 = vpop.f32.mrf.mxu0
  %v101 = vadd.f32 %v29, %v100
  %v102 = vpop.f32.mrf.mxu0
  %v103 = vpop.f32.mrf.mxu0
  %v104 = vadd.f32 %v29, %v103
  %v105 = vpop.f32.mrf.mxu0
  %106 = vmatprep.mubr.bf16.mxu0 0
  %107 = vmatmul.mubr.bf16.gmra.mxu0 %v61
  %v108 = vpop.f32.mrf.mxu0
  %v109 = vadd.f32 %v29, %v108
  %v110 = vpop.f32.mrf.mxu0
  %v111 = vpop.f32.mrf.mxu0
  %v112 = vadd.f32 %v29, %v111
  %v113 = vpop.f32.mrf.mxu0
  %114 = vmatprep.mubr.bf16.mxu0 0
  %115 = vmatmul.mubr.bf16.gmra.mxu0 %v64
  %v116 = vpop.f32.mrf.mxu0
  %v117 = vadd.f32 %v29, %v116
  %v118 = vpop.f32.mrf.mxu0
  %v119 = vpop.f32.mrf.mxu0
  %v120 = vpop.f32.mrf.mxu0
  %121 = vdwg.mxu0
  %122 = vst [vmem:[%s3] sm:$0xff] %v101
  %123 = vst [vmem:[%s3 + $0x8] sm:$0xff] %v104
  %124 = vst [vmem:[%s3 + $0x10] sm:$0xff] %v109
  %125 = vst [vmem:[%s3 + $0x18] sm:$0xff] %v112
  %126 = vst [vmem:[%s3 + $0x20] sm:$0xff] %v117
  // Predicated region
  $region14: #{_lambda_.19} parent=0 // pred_check
    _
  $region15: #{_lambda_.19} parent=0 // pred_check_branch
    %128 = sbr.rel (0) target = $region17
  $region16: #{_lambda_.19} parent=0 // pred_region
    _
  $region17: #{_lambda_.19} parent=0 // pred_fallthru
    _
  // Predicated region
  $region18: #{_lambda_.19} parent=0 // pred_check
    _
  $region19: #{_lambda_.19} parent=0 // pred_check_branch
    %130 = sbr.rel (0) target = $region21
  $region20: #{_lambda_.19} parent=0 // pred_region
    _
  $region21: #{_lambda_.19} parent=0 // pred_fallthru
    _

// kernel: _lambda_.21
$region0: #{_lambda_.21}
  #allocation0 [shape = 'u32[]', space=smem, size = 0x4, offset = 0x4, fixed_abs, tag = 'smem constant byte address 0x4 - core index']
  #allocation1 [shape = 'u32[144,128]{1,0:T(1,128)}', space=vmem, size = 0x12000, scoped, tag = 'internal scratch']
  %s0 = inlined_call_operand.vmem [shape: bf16[40,32], index: 0, kind: input, shape index: {}]
  %s1 = inlined_call_operand.vmem [shape: bf16[32,128], index: 1, kind: input, shape index: {}]
  %s2 = inlined_call_operand.vmem [shape: f32[1,128], index: 2, kind: input, shape index: {}]
  %s3 = inlined_call_operand.vmem [shape: f32[40,128], index: 3, kind: output, shape index: {}]
  %s4 = sld [smem:[#allocation0]]
  $region22: #{_lambda_.21} parent=0
    _
  %s6 = ssub.s32 1, %s4
  %s7 = scalar_select 0, %s6, %s4
  // Predicated region
  $region2: #{_lambda_.21} parent=0 // pred_check
    _
  $region3: #{_lambda_.21} parent=0 // pred_check_branch
    %9 = sbr.rel (0) target = $region5
  $region4: #{_lambda_.21} parent=0 // pred_region
    _
  $region5: #{_lambda_.21} parent=0 // pred_fallthru
    _
  // Predicated region
  $region6: #{_lambda_.21} parent=0 // pred_check
    _
  $region7: #{_lambda_.21} parent=0 // pred_check_branch
    %11 = sbr.rel (0) target = $region9
  $region8: #{_lambda_.21} parent=0 // pred_region
    _
  $region9: #{_lambda_.21} parent=0 // pred_fallthru
    _
  // Predicated region
  $region10: #{_lambda_.21} parent=0 // pred_check
    _
  $region11: #{_lambda_.21} parent=0 // pred_check_branch
    %13 = sbr.rel (0) target = $region13
  $region12: #{_lambda_.21} parent=0 // pred_region
    _
  $region13: #{_lambda_.21} parent=0 // pred_fallthru
    _
  %v15 = vld [vmem:[%s0] sm:$0xf]
  %v16 = vld [vmem:[%s0 + $0x4] sm:$0xf]
  %v17 = vld [vmem:[%s0 + $0x8] sm:$0xf]
  %v18 = vld [vmem:[%s0 + $0xc] sm:$0xf]
  %v19 = vld [vmem:[%s0 + $0x10] sm:$0xf]
  %v20 = vld [vmem:[%s1] sm:$0xf]
  %v21 = vld [vmem:[%s1 + $0x4] sm:$0xf]
  %v22 = vld [vmem:[%s1 + $0x8] sm:$0xf]
  %v23 = vld [vmem:[%s1 + $0xc] sm:$0xf]
  %v24 = vld [vmem:[%s2] sm:$0x1]
  %v26 = vlaneseq
  %v27 = vshrl.u32 %v26, 7
  %v28 = vsub.s32 0, %v27
  %v29 = vrot.slane %v24, %v28
  %v36 = vunpack.c.l.b16 %v15
  %v37 = vunpack.c.l.b16 %v16
  %v38 = vunpack.c.l.b16 %v17
  %v39 = vunpack.c.l.b16 %v18
  %v40 = vunpack.c.l.b16 %v19
  %v41 = vpack.c.b16 %v37, %v36
  %v42 = vpack.c.b16 %v39, %v38
  %v43 = vpack.c.b16 %v40, %v40
  %v48 = vunpack.c.l.b16 %v20
  %v49 = vunpack.c.l.b16 %v21
  %v50 = vunpack.c.l.b16 %v22
  %v51 = vunpack.c.l.b16 %v23
  %v52 = vpack.c.b16 %v49, %v48
  %v53 = vpack.c.b16 %v51, %v50
  %vm56 = vcmask 261120
  %v58 = vsel %vm56, %v41, 0
  %v61 = vsel %vm56, %v42, 0
  %v64 = vsel %vm56, %v43, 0
  %66 = vmatprep.subr.bf16.mxu0 0
  %67 = vmatpush1.bf16.msra.mxu0 0
  %68 = vmatprep.subr.bf16.mxu0 0
  %69 = vmatpush1.bf16.msra.mxu0 0
  %70 = vmatprep.subr.bf16.mxu0 0
  %71 = vmatpush1.bf16.msra.mxu0 0
  %72 = vmatprep.subr.bf16.mxu0 0
  %73 = vmatpush1.bf16.msra.mxu0 0
  %74 = vmatprep.subr.bf16.mxu0 0
  %75 = vmatpush1.bf16.msra.mxu0 0
  %76 = vmatprep.subr.bf16.mxu0 0
  %77 = vmatpush1.bf16.msra.mxu0 0
  %78 = vmatprep.subr.bf16.mxu0 0
  %79 = vmatpush1.bf16.msra.mxu0 %v53
  %80 = vmatprep.subr.bf16.mxu0 0
  %81 = vmatpush1.bf16.msra.mxu0 %v52
  %82 = vmatprep.subr.bf16.mxu0 0
  %83 = vmatpush2.bf16.msra.mxu0 0
  %84 = vmatprep.subr.bf16.mxu0 0
  %85 = vmatpush2.bf16.msra.mxu0 0
  %86 = vmatprep.subr.bf16.mxu0 0
  %87 = vmatpush2.bf16.msra.mxu0 0
  %88 = vmatprep.subr.bf16.mxu0 0
  %89 = vmatpush2.bf16.msra.mxu0 0
  %90 = vmatprep.subr.bf16.mxu0 0
  %91 = vmatpush2.bf16.msra.mxu0 0
  %92 = vmatprep.subr.bf16.mxu0 0
  %93 = vmatpush2.bf16.msra.mxu0 0
  %94 = vmatprep.subr.bf16.mxu0 0
  %95 = vmatpush2.bf16.msra.mxu0 0
  %96 = vmatprep.subr.bf16.mxu0 0
  %97 = vmatpush2.bf16.msra.mxu0 0
  %98 = vmatprep.mubr.bf16.mxu0 0
  %99 = vmatmul.mubr.bf16.gmra.mxu0 %v58
  %v100 = vpop.f32.mrf.mxu0
  %v101 = vadd.f32 %v29, %v100
  %v102 = vpop.f32.mrf.mxu0
  %v103 = vpop.f32.mrf.mxu0
  %v104 = vadd.f32 %v29, %v103
  %v105 = vpop.f32.mrf.mxu0
  %106 = vmatprep.mubr.bf16.mxu0 0
  %107 = vmatmul.mubr.bf16.gmra.mxu0 %v61
  %v108 = vpop.f32.mrf.mxu0
  %v109 = vadd.f32 %v29, %v108
  %v110 = vpop.f32.mrf.mxu0
  %v111 = vpop.f32.mrf.mxu0
  %v112 = vadd.f32 %v29, %v111
  %v113 = vpop.f32.mrf.mxu0
  %114 = vmatprep.mubr.bf16.mxu0 0
  %115 = vmatmul.mubr.bf16.gmra.mxu0 %v64
  %v116 = vpop.f32.mrf.mxu0
  %v117 = vadd.f32 %v29, %v116
  %v118 = vpop.f32.mrf.mxu0
  %v119 = vpop.f32.mrf.mxu0
  %v120 = vpop.f32.mrf.mxu0
  %121 = vdwg.mxu0
  %122 = vst [vmem:[%s3] sm:$0xff] %v101
  %123 = vst [vmem:[%s3 + $0x8] sm:$0xff] %v104
  %124 = vst [vmem:[%s3 + $0x10] sm:$0xff] %v109
  %125 = vst [vmem:[%s3 + $0x18] sm:$0xff] %v112
  %126 = vst [vmem:[%s3 + $0x20] sm:$0xff] %v117
  // Predicated region
  $region14: #{_lambda_.21} parent=0 // pred_check
    _
  $region15: #{_lambda_.21} parent=0 // pred_check_branch
    %128 = sbr.rel (0) target = $region17
  $region16: #{_lambda_.21} parent=0 // pred_region
    _
  $region17: #{_lambda_.21} parent=0 // pred_fallthru
    _
  // Predicated region
  $region18: #{_lambda_.21} parent=0 // pred_check
    _
  $region19: #{_lambda_.21} parent=0 // pred_check_branch
    %130 = sbr.rel (0) target = $region21
  $region20: #{_lambda_.21} parent=0 // pred_region
    _
  $region21: #{_lambda_.21} parent=0 // pred_fallthru
    _

// kernel: _lambda_.24
$region0: #{_lambda_.24}
  #allocation0 [shape = 'u32[]', space=smem, size = 0x4, offset = 0x4, fixed_abs, tag = 'smem constant byte address 0x4 - core index']
  #allocation1 [shape = 'u32[144,128]{1,0:T(1,128)}', space=vmem, size = 0x12000, scoped, tag = 'internal scratch']
  %s0 = inlined_call_operand.vmem [shape: bf16[40,64], index: 0, kind: input, shape index: {}]
  %s1 = inlined_call_operand.vmem [shape: bf16[64,128], index: 1, kind: input, shape index: {}]
  %s2 = inlined_call_operand.vmem [shape: f32[1,128], index: 2, kind: input, shape index: {}]
  %s3 = inlined_call_operand.vmem [shape: f32[40,128], index: 3, kind: output, shape index: {}]
  %s4 = sld [smem:[#allocation0]]
  $region22: #{_lambda_.24} parent=0
    _
  %s6 = ssub.s32 1, %s4
  %s7 = scalar_select 0, %s6, %s4
  // Predicated region
  $region2: #{_lambda_.24} parent=0 // pred_check
    _
  $region3: #{_lambda_.24} parent=0 // pred_check_branch
    %9 = sbr.rel (0) target = $region5
  $region4: #{_lambda_.24} parent=0 // pred_region
    _
  $region5: #{_lambda_.24} parent=0 // pred_fallthru
    _
  // Predicated region
  $region6: #{_lambda_.24} parent=0 // pred_check
    _
  $region7: #{_lambda_.24} parent=0 // pred_check_branch
    %11 = sbr.rel (0) target = $region9
  $region8: #{_lambda_.24} parent=0 // pred_region
    _
  $region9: #{_lambda_.24} parent=0 // pred_fallthru
    _
  // Predicated region
  $region10: #{_lambda_.24} parent=0 // pred_check
    _
  $region11: #{_lambda_.24} parent=0 // pred_check_branch
    %13 = sbr.rel (0) target = $region13
  $region12: #{_lambda_.24} parent=0 // pred_region
    _
  $region13: #{_lambda_.24} parent=0 // pred_fallthru
    _
  %v15 = vld [vmem:[%s0] sm:$0xf]
  %v16 = vld [vmem:[%s0 + $0x4] sm:$0xf]
  %v17 = vld [vmem:[%s0 + $0x8] sm:$0xf]
  %v18 = vld [vmem:[%s0 + $0xc] sm:$0xf]
  %v19 = vld [vmem:[%s0 + $0x10] sm:$0xf]
  %v20 = vld [vmem:[%s1] sm:$0xf]
  %v21 = vld [vmem:[%s1 + $0x4] sm:$0xf]
  %v22 = vld [vmem:[%s1 + $0x8] sm:$0xf]
  %v23 = vld [vmem:[%s1 + $0xc] sm:$0xf]
  %v24 = vld [vmem:[%s1 + $0x10] sm:$0xf]
  %v25 = vld [vmem:[%s1 + $0x14] sm:$0xf]
  %v26 = vld [vmem:[%s1 + $0x18] sm:$0xf]
  %v27 = vld [vmem:[%s1 + $0x1c] sm:$0xf]
  %v28 = vld [vmem:[%s2] sm:$0x1]
  %v30 = vlaneseq
  %v31 = vshrl.u32 %v30, 7
  %v32 = vsub.s32 0, %v31
  %v33 = vrot.slane %v28, %v32
  %v40 = vunpack.c.l.b16 %v15
  %v41 = vunpack.c.l.b16 %v16
  %v42 = vunpack.c.l.b16 %v17
  %v43 = vunpack.c.l.b16 %v18
  %v44 = vunpack.c.l.b16 %v19
  %v45 = vpack.c.b16 %v41, %v40
  %v46 = vpack.c.b16 %v43, %v42
  %v47 = vpack.c.b16 %v44, %v44
  %v56 = vunpack.c.l.b16 %v20
  %v57 = vunpack.c.l.b16 %v21
  %v58 = vunpack.c.l.b16 %v22
  %v59 = vunpack.c.l.b16 %v23
  %v60 = vunpack.c.l.b16 %v24
  %v61 = vunpack.c.l.b16 %v25
  %v62 = vunpack.c.l.b16 %v26
  %v63 = vunpack.c.l.b16 %v27
  %v64 = vpack.c.b16 %v57, %v56
  %v65 = vpack.c.b16 %v59, %v58
  %v66 = vpack.c.b16 %v61, %v60
  %v67 = vpack.c.b16 %v63, %v62
  %vm72 = vcmask 523264
  %v74 = vsel %vm72, %v45, 0
  %v77 = vsel %vm72, %v46, 0
  %v80 = vsel %vm72, %v47, 0
  %82 = vmatprep.subr.bf16.mxu0 0
  %83 = vmatpush1.bf16.msra.mxu0 0
  %84 = vmatprep.subr.bf16.mxu0 0
  %85 = vmatpush1.bf16.msra.mxu0 0
  %86 = vmatprep.subr.bf16.mxu0 0
  %87 = vmatpush1.bf16.msra.mxu0 0
  %88 = vmatprep.subr.bf16.mxu0 0
  %89 = vmatpush1.bf16.msra.mxu0 0
  %90 = vmatprep.subr.bf16.mxu0 0
  %91 = vmatpush1.bf16.msra.mxu0 %v67
  %92 = vmatprep.subr.bf16.mxu0 0
  %93 = vmatpush1.bf16.msra.mxu0 %v66
  %94 = vmatprep.subr.bf16.mxu0 0
  %95 = vmatpush1.bf16.msra.mxu0 %v65
  %96 = vmatprep.subr.bf16.mxu0 0
  %97 = vmatpush1.bf16.msra.mxu0 %v64
  %98 = vmatprep.subr.bf16.mxu0 0
  %99 = vmatpush2.bf16.msra.mxu0 0
  %100 = vmatprep.subr.bf16.mxu0 0
  %101 = vmatpush2.bf16.msra.mxu0 0
  %102 = vmatprep.subr.bf16.mxu0 0
  %103 = vmatpush2.bf16.msra.mxu0 0
  %104 = vmatprep.subr.bf16.mxu0 0
  %105 = vmatpush2.bf16.msra.mxu0 0
  %106 = vmatprep.subr.bf16.mxu0 0
  %107 = vmatpush2.bf16.msra.mxu0 0
  %108 = vmatprep.subr.bf16.mxu0 0
  %109 = vmatpush2.bf16.msra.mxu0 0
  %110 = vmatprep.subr.bf16.mxu0 0
  %111 = vmatpush2.bf16.msra.mxu0 0
  %112 = vmatprep.subr.bf16.mxu0 0
  %113 = vmatpush2.bf16.msra.mxu0 0
  %114 = vmatprep.mubr.bf16.mxu0 0
  %115 = vmatmul.mubr.bf16.gmra.mxu0 %v74
  %v116 = vpop.f32.mrf.mxu0
  %v117 = vadd.f32 %v33, %v116
  %v118 = vpop.f32.mrf.mxu0
  %v119 = vpop.f32.mrf.mxu0
  %v120 = vadd.f32 %v33, %v119
  %v121 = vpop.f32.mrf.mxu0
  %122 = vmatprep.mubr.bf16.mxu0 0
  %123 = vmatmul.mubr.bf16.gmra.mxu0 %v77
  %v124 = vpop.f32.mrf.mxu0
  %v125 = vadd.f32 %v33, %v124
  %v126 = vpop.f32.mrf.mxu0
  %v127 = vpop.f32.mrf.mxu0
  %v128 = vadd.f32 %v33, %v127
  %v129 = vpop.f32.mrf.mxu0
  %130 = vmatprep.mubr.bf16.mxu0 0
  %131 = vmatmul.mubr.bf16.gmra.mxu0 %v80
  %v132 = vpop.f32.mrf.mxu0
  %v133 = vadd.f32 %v33, %v132
  %v134 = vpop.f32.mrf.mxu0
  %v135 = vpop.f32.mrf.mxu0
  %v136 = vpop.f32.mrf.mxu0
  %137 = vdwg.mxu0
  %138 = vst [vmem:[%s3] sm:$0xff] %v117
  %139 = vst [vmem:[%s3 + $0x8] sm:$0xff] %v120
  %140 = vst [vmem:[%s3 + $0x10] sm:$0xff] %v125
  %141 = vst [vmem:[%s3 + $0x18] sm:$0xff] %v128
  %142 = vst [vmem:[%s3 + $0x20] sm:$0xff] %v133
  // Predicated region
  $region14: #{_lambda_.24} parent=0 // pred_check
    _
  $region15: #{_lambda_.24} parent=0 // pred_check_branch
    %144 = sbr.rel (0) target = $region17
  $region16: #{_lambda_.24} parent=0 // pred_region
    _
  $region17: #{_lambda_.24} parent=0 // pred_fallthru
    _
  // Predicated region
  $region18: #{_lambda_.24} parent=0 // pred_check
    _
  $region19: #{_lambda_.24} parent=0 // pred_check_branch
    %146 = sbr.rel (0) target = $region21
  $region20: #{_lambda_.24} parent=0 // pred_region
    _
  $region21: #{_lambda_.24} parent=0 // pred_fallthru
    _

// kernel: _lambda_.32
$region0: #{_lambda_.32}
  #allocation0 [shape = 'u32[]', space=smem, size = 0x4, offset = 0x4, fixed_abs, tag = 'smem constant byte address 0x4 - core index']
  #allocation1 [shape = 'u32[144,128]{1,0:T(1,128)}', space=vmem, size = 0x12000, scoped, tag = 'internal scratch']
  %s0 = inlined_call_operand.vmem [shape: f32[8,32], index: 0, kind: input, shape index: {}]
  %s1 = inlined_call_operand.vmem [shape: f32[1,32], index: 1, kind: input, shape index: {}]
  %s2 = inlined_call_operand.vmem [shape: f32[1,32], index: 2, kind: input, shape index: {}]
  %s3 = inlined_call_operand.vmem [shape: f32[8,32], index: 3, kind: output, shape index: {}]
  %s4 = sld [smem:[#allocation0]]
  $region22: #{_lambda_.32} parent=0
    _
  %s6 = ssub.s32 1, %s4
  %s7 = scalar_select 0, %s6, %s4
  // Predicated region
  $region2: #{_lambda_.32} parent=0 // pred_check
    _
  $region3: #{_lambda_.32} parent=0 // pred_check_branch
    %9 = sbr.rel (0) target = $region5
  $region4: #{_lambda_.32} parent=0 // pred_region
    _
  $region5: #{_lambda_.32} parent=0 // pred_fallthru
    _
  // Predicated region
  $region6: #{_lambda_.32} parent=0 // pred_check
    _
  $region7: #{_lambda_.32} parent=0 // pred_check_branch
    %11 = sbr.rel (0) target = $region9
  $region8: #{_lambda_.32} parent=0 // pred_region
    _
  $region9: #{_lambda_.32} parent=0 // pred_fallthru
    _
  // Predicated region
  $region10: #{_lambda_.32} parent=0 // pred_check
    _
  $region11: #{_lambda_.32} parent=0 // pred_check_branch
    %13 = sbr.rel (0) target = $region13
  $region12: #{_lambda_.32} parent=0 // pred_region
    _
  $region13: #{_lambda_.32} parent=0 // pred_fallthru
    _
  %v14 = vld [vmem:[%s0] sm:$0xff]
  %vm15 = vcmask 261120
  %v16 = vsel %vm15, %v14, 0.0
  %17 = vadd.xlane.f32.xlu0 %v16
  %v18 = vpop.xlane.xlu0 %17
  %v19 = vrcp.pop 32.0
  %v20 = vmul.f32 %v18, %v19
  %v21 = vsub.f32 %v14, %v20
  %v22 = vmul.f32 %v21, %v21
  %v23 = vsel %vm15, %v22, 0.0
  %24 = vadd.xlane.f32.xlu0 %v23
  %v25 = vpop.xlane.xlu0 %24
  %v26 = vmul.f32 %v25, %v19
  %v27 = vadd.f32 %v26, 1e-05
  %v28 = vrsqrt.pop %v27
  %v29 = vmul.f32 %v21, %v28
  %v30 = vld [vmem:[%s1] sm:$0x1]
  %v32 = vlaneseq
  %v33 = vshrl.u32 %v32, 7
  %v34 = vsub.s32 0, %v33
  %v35 = vrot.slane %v30, %v34
  %v37 = vmul.f32 %v29, %v35
  %v38 = vld [vmem:[%s2] sm:$0x1]
  %v40 = vlaneseq
  %v41 = vshrl.u32 %v40, 7
  %v42 = vsub.s32 0, %v41
  %v43 = vrot.slane %v38, %v42
  %v45 = vadd.f32 %v37, %v43
  %46 = vst.msk [vmem:[%s3] sm:$0xff] %vm15, %v45
  // Predicated region
  $region14: #{_lambda_.32} parent=0 // pred_check
    _
  $region15: #{_lambda_.32} parent=0 // pred_check_branch
    %48 = sbr.rel (0) target = $region17
  $region16: #{_lambda_.32} parent=0 // pred_region
    _
  $region17: #{_lambda_.32} parent=0 // pred_fallthru
    _
  // Predicated region
  $region18: #{_lambda_.32} parent=0 // pred_check
    _
  $region19: #{_lambda_.32} parent=0 // pred_check_branch
    %50 = sbr.rel (0) target = $region21
  $region20: #{_lambda_.32} parent=0 // pred_region
    _
  $region21: #{_lambda_.32} parent=0 // pred_fallthru
    _

// kernel: _lambda_.23
$region0: #{_lambda_.23}
  #allocation0 [shape = 'u32[]', space=smem, size = 0x4, offset = 0x4, fixed_abs, tag = 'smem constant byte address 0x4 - core index']
  #allocation1 [shape = 'u32[144,128]{1,0:T(1,128)}', space=vmem, size = 0x12000, scoped, tag = 'internal scratch']
  %s0 = inlined_call_operand.vmem [shape: bf16[40,32], index: 0, kind: input, shape index: {}]
  %s1 = inlined_call_operand.vmem [shape: bf16[32,128], index: 1, kind: input, shape index: {}]
  %s2 = inlined_call_operand.vmem [shape: f32[1,128], index: 2, kind: input, shape index: {}]
  %s3 = inlined_call_operand.vmem [shape: f32[40,128], index: 3, kind: output, shape index: {}]
  %s4 = sld [smem:[#allocation0]]
  $region22: #{_lambda_.23} parent=0
    _
  %s6 = ssub.s32 1, %s4
  %s7 = scalar_select 0, %s6, %s4
  // Predicated region
  $region2: #{_lambda_.23} parent=0 // pred_check
    _
  $region3: #{_lambda_.23} parent=0 // pred_check_branch
    %9 = sbr.rel (0) target = $region5
  $region4: #{_lambda_.23} parent=0 // pred_region
    _
  $region5: #{_lambda_.23} parent=0 // pred_fallthru
    _
  // Predicated region
  $region6: #{_lambda_.23} parent=0 // pred_check
    _
  $region7: #{_lambda_.23} parent=0 // pred_check_branch
    %11 = sbr.rel (0) target = $region9
  $region8: #{_lambda_.23} parent=0 // pred_region
    _
  $region9: #{_lambda_.23} parent=0 // pred_fallthru
    _
  // Predicated region
  $region10: #{_lambda_.23} parent=0 // pred_check
    _
  $region11: #{_lambda_.23} parent=0 // pred_check_branch
    %13 = sbr.rel (0) target = $region13
  $region12: #{_lambda_.23} parent=0 // pred_region
    _
  $region13: #{_lambda_.23} parent=0 // pred_fallthru
    _
  %v15 = vld [vmem:[%s0] sm:$0xf]
  %v16 = vld [vmem:[%s0 + $0x4] sm:$0xf]
  %v17 = vld [vmem:[%s0 + $0x8] sm:$0xf]
  %v18 = vld [vmem:[%s0 + $0xc] sm:$0xf]
  %v19 = vld [vmem:[%s0 + $0x10] sm:$0xf]
  %v20 = vld [vmem:[%s1] sm:$0xf]
  %v21 = vld [vmem:[%s1 + $0x4] sm:$0xf]
  %v22 = vld [vmem:[%s1 + $0x8] sm:$0xf]
  %v23 = vld [vmem:[%s1 + $0xc] sm:$0xf]
  %v24 = vld [vmem:[%s2] sm:$0x1]
  %v26 = vlaneseq
  %v27 = vshrl.u32 %v26, 7
  %v28 = vsub.s32 0, %v27
  %v29 = vrot.slane %v24, %v28
  %v36 = vunpack.c.l.b16 %v15
  %v37 = vunpack.c.l.b16 %v16
  %v38 = vunpack.c.l.b16 %v17
  %v39 = vunpack.c.l.b16 %v18
  %v40 = vunpack.c.l.b16 %v19
  %v41 = vpack.c.b16 %v37, %v36
  %v42 = vpack.c.b16 %v39, %v38
  %v43 = vpack.c.b16 %v40, %v40
  %v48 = vunpack.c.l.b16 %v20
  %v49 = vunpack.c.l.b16 %v21
  %v50 = vunpack.c.l.b16 %v22
  %v51 = vunpack.c.l.b16 %v23
  %v52 = vpack.c.b16 %v49, %v48
  %v53 = vpack.c.b16 %v51, %v50
  %vm56 = vcmask 261120
  %v58 = vsel %vm56, %v41, 0
  %v61 = vsel %vm56, %v42, 0
  %v64 = vsel %vm56, %v43, 0
  %66 = vmatprep.subr.bf16.mxu0 0
  %67 = vmatpush1.bf16.msra.mxu0 0
  %68 = vmatprep.subr.bf16.mxu0 0
  %69 = vmatpush1.bf16.msra.mxu0 0
  %70 = vmatprep.subr.bf16.mxu0 0
  %71 = vmatpush1.bf16.msra.mxu0 0
  %72 = vmatprep.subr.bf16.mxu0 0
  %73 = vmatpush1.bf16.msra.mxu0 0
  %74 = vmatprep.subr.bf16.mxu0 0
  %75 = vmatpush1.bf16.msra.mxu0 0
  %76 = vmatprep.subr.bf16.mxu0 0
  %77 = vmatpush1.bf16.msra.mxu0 0
  %78 = vmatprep.subr.bf16.mxu0 0
  %79 = vmatpush1.bf16.msra.mxu0 %v53
  %80 = vmatprep.subr.bf16.mxu0 0
  %81 = vmatpush1.bf16.msra.mxu0 %v52
  %82 = vmatprep.subr.bf16.mxu0 0
  %83 = vmatpush2.bf16.msra.mxu0 0
  %84 = vmatprep.subr.bf16.mxu0 0
  %85 = vmatpush2.bf16.msra.mxu0 0
  %86 = vmatprep.subr.bf16.mxu0 0
  %87 = vmatpush2.bf16.msra.mxu0 0
  %88 = vmatprep.subr.bf16.mxu0 0
  %89 = vmatpush2.bf16.msra.mxu0 0
  %90 = vmatprep.subr.bf16.mxu0 0
  %91 = vmatpush2.bf16.msra.mxu0 0
  %92 = vmatprep.subr.bf16.mxu0 0
  %93 = vmatpush2.bf16.msra.mxu0 0
  %94 = vmatprep.subr.bf16.mxu0 0
  %95 = vmatpush2.bf16.msra.mxu0 0
  %96 = vmatprep.subr.bf16.mxu0 0
  %97 = vmatpush2.bf16.msra.mxu0 0
  %98 = vmatprep.mubr.bf16.mxu0 0
  %99 = vmatmul.mubr.bf16.gmra.mxu0 %v58
  %v100 = vpop.f32.mrf.mxu0
  %v101 = vadd.f32 %v29, %v100
  %v102 = vpop.f32.mrf.mxu0
  %v103 = vpop.f32.mrf.mxu0
  %v104 = vadd.f32 %v29, %v103
  %v105 = vpop.f32.mrf.mxu0
  %106 = vmatprep.mubr.bf16.mxu0 0
  %107 = vmatmul.mubr.bf16.gmra.mxu0 %v61
  %v108 = vpop.f32.mrf.mxu0
  %v109 = vadd.f32 %v29, %v108
  %v110 = vpop.f32.mrf.mxu0
  %v111 = vpop.f32.mrf.mxu0
  %v112 = vadd.f32 %v29, %v111
  %v113 = vpop.f32.mrf.mxu0
  %114 = vmatprep.mubr.bf16.mxu0 0
  %115 = vmatmul.mubr.bf16.gmra.mxu0 %v64
  %v116 = vpop.f32.mrf.mxu0
  %v117 = vadd.f32 %v29, %v116
  %v118 = vpop.f32.mrf.mxu0
  %v119 = vpop.f32.mrf.mxu0
  %v120 = vpop.f32.mrf.mxu0
  %121 = vdwg.mxu0
  %v122 = vmul.f32 %v101, 0.5
  %v123 = vmul.f32 %v104, 0.5
  %v124 = vmul.f32 %v109, 0.5
  %v125 = vmul.f32 %v112, 0.5
  %v126 = vmul.f32 %v117, 0.5
  %v127 = vmul.f32 %v101, 0.044715
  %v128 = vmul.f32 %v104, 0.044715
  %v129 = vmul.f32 %v109, 0.044715
  %v130 = vmul.f32 %v112, 0.044715
  %v131 = vmul.f32 %v117, 0.044715
  %v132 = vmul.f32 %v127, %v101
  %v133 = vmul.f32 %v128, %v104
  %v134 = vmul.f32 %v129, %v109
  %v135 = vmul.f32 %v130, %v112
  %v136 = vmul.f32 %v131, %v117
  %v137 = vmul.f32 %v132, %v101
  %v138 = vmul.f32 %v133, %v104
  %v139 = vmul.f32 %v134, %v109
  %v140 = vmul.f32 %v135, %v112
  %v141 = vmul.f32 %v136, %v117
  %v142 = vadd.f32 %v101, %v137
  %v143 = vadd.f32 %v104, %v138
  %v144 = vadd.f32 %v109, %v139
  %v145 = vadd.f32 %v112, %v140
  %v146 = vadd.f32 %v117, %v141
  %v147 = vmul.f32 %v142, 0.7978846
  %v148 = vmul.f32 %v143, 0.7978846
  %v149 = vmul.f32 %v144, 0.7978846
  %v150 = vmul.f32 %v145, 0.7978846
  %v151 = vmul.f32 %v146, 0.7978846
  %v152 = vtanh.pop %v147
  %v153 = vtanh.pop %v148
  %v154 = vtanh.pop %v149
  %v155 = vtanh.pop %v150
  %v156 = vtanh.pop %v151
  %v157 = vadd.f32 %v152, 1.0
  %v158 = vadd.f32 %v153, 1.0
  %v159 = vadd.f32 %v154, 1.0
  %v160 = vadd.f32 %v155, 1.0
  %v161 = vadd.f32 %v156, 1.0
  %v162 = vmul.f32 %v122, %v157
  %v163 = vmul.f32 %v123, %v158
  %v164 = vmul.f32 %v124, %v159
  %v165 = vmul.f32 %v125, %v160
  %v166 = vmul.f32 %v126, %v161
  %167 = vst [vmem:[%s3] sm:$0xff] %v162
  %168 = vst [vmem:[%s3 + $0x8] sm:$0xff] %v163
  %169 = vst [vmem:[%s3 + $0x10] sm:$0xff] %v164
  %170 = vst [vmem:[%s3 + $0x18] sm:$0xff] %v165
  %171 = vst [vmem:[%s3 + $0x20] sm:$0xff] %v166
  // Predicated region
  $region14: #{_lambda_.23} parent=0 // pred_check
    _
  $region15: #{_lambda_.23} parent=0 // pred_check_branch
    %173 = sbr.rel (0) target = $region17
  $region16: #{_lambda_.23} parent=0 // pred_region
    _
  $region17: #{_lambda_.23} parent=0 // pred_fallthru
    _
  // Predicated region
  $region18: #{_lambda_.23} parent=0 // pred_check
    _
  $region19: #{_lambda_.23} parent=0 // pred_check_branch
    %175 = sbr.rel (0) target = $region21
  $region20: #{_lambda_.23} parent=0 // pred_region
    _
  $region21: #{_lambda_.23} parent=0 // pred_fallthru
    _

// kernel: _lambda_.33
$region0: #{_lambda_.33}
  #allocation0 [shape = 'u32[]', space=smem, size = 0x4, offset = 0x4, fixed_abs, tag = 'smem constant byte address 0x4 - core index']
  #allocation1 [shape = 'u32[144,128]{1,0:T(1,128)}', space=vmem, size = 0x12000, scoped, tag = 'internal scratch']
  %s0 = inlined_call_operand.vmem [shape: bf16[8,32], index: 0, kind: input, shape index: {}]
  %s1 = inlined_call_operand.vmem [shape: bf16[32,128], index: 1, kind: input, shape index: {}]
  %s2 = inlined_call_operand.vmem [shape: f32[1,128], index: 2, kind: input, shape index: {}]
  %s3 = inlined_call_operand.vmem [shape: f32[8,128], index: 3, kind: output, shape index: {}]
  %s4 = sld [smem:[#allocation0]]
  $region22: #{_lambda_.33} parent=0
    _
  %s6 = ssub.s32 1, %s4
  %s7 = scalar_select 0, %s6, %s4
  // Predicated region
  $region2: #{_lambda_.33} parent=0 // pred_check
    _
  $region3: #{_lambda_.33} parent=0 // pred_check_branch
    %9 = sbr.rel (0) target = $region5
  $region4: #{_lambda_.33} parent=0 // pred_region
    _
  $region5: #{_lambda_.33} parent=0 // pred_fallthru
    _
  // Predicated region
  $region6: #{_lambda_.33} parent=0 // pred_check
    _
  $region7: #{_lambda_.33} parent=0 // pred_check_branch
    %11 = sbr.rel (0) target = $region9
  $region8: #{_lambda_.33} parent=0 // pred_region
    _
  $region9: #{_lambda_.33} parent=0 // pred_fallthru
    _
  // Predicated region
  $region10: #{_lambda_.33} parent=0 // pred_check
    _
  $region11: #{_lambda_.33} parent=0 // pred_check_branch
    %13 = sbr.rel (0) target = $region13
  $region12: #{_lambda_.33} parent=0 // pred_region
    _
  $region13: #{_lambda_.33} parent=0 // pred_fallthru
    _
  %v15 = vld [vmem:[%s0] sm:$0xf]
  %v16 = vld [vmem:[%s1] sm:$0xf]
  %v17 = vld [vmem:[%s1 + $0x4] sm:$0xf]
  %v18 = vld [vmem:[%s1 + $0x8] sm:$0xf]
  %v19 = vld [vmem:[%s1 + $0xc] sm:$0xf]
  %v20 = vld [vmem:[%s2] sm:$0x1]
  %v22 = vlaneseq
  %v23 = vshrl.u32 %v22, 7
  %v24 = vsub.s32 0, %v23
  %v25 = vrot.slane %v20, %v24
  %v31 = vunpack.c.l.b16 %v16
  %v32 = vunpack.c.l.b16 %v17
  %v33 = vunpack.c.l.b16 %v18
  %v34 = vunpack.c.l.b16 %v19
  %v35 = vpack.c.b16 %v32, %v31
  %v36 = vpack.c.b16 %v34, %v33
  %vm39 = vcmask 261120
  %v41 = vsel %vm39, %v15, 0
  %43 = vmatprep.subr.bf16.mxu0 0
  %44 = vmatpush1.bf16.msra.mxu0 0
  %45 = vmatprep.subr.bf16.mxu0 0
  %46 = vmatpush1.bf16.msra.mxu0 0
  %47 = vmatprep.subr.bf16.mxu0 0
  %48 = vmatpush1.bf16.msra.mxu0 0
  %49 = vmatprep.subr.bf16.mxu0 0
  %50 = vmatpush1.bf16.msra.mxu0 0
  %51 = vmatprep.subr.bf16.mxu0 0
  %52 = vmatpush1.bf16.msra.mxu0 0
  %53 = vmatprep.subr.bf16.mxu0 0
  %54 = vmatpush1.bf16.msra.mxu0 0
  %55 = vmatprep.subr.bf16.mxu0 0
  %56 = vmatpush1.bf16.msra.mxu0 %v36
  %57 = vmatprep.subr.bf16.mxu0 0
  %58 = vmatpush1.bf16.msra.mxu0 %v35
  %59 = vmatprep.subr.bf16.mxu0 0
  %60 = vmatpush2.bf16.msra.mxu0 0
  %61 = vmatprep.subr.bf16.mxu0 0
  %62 = vmatpush2.bf16.msra.mxu0 0
  %63 = vmatprep.subr.bf16.mxu0 0
  %64 = vmatpush2.bf16.msra.mxu0 0
  %65 = vmatprep.subr.bf16.mxu0 0
  %66 = vmatpush2.bf16.msra.mxu0 0
  %67 = vmatprep.subr.bf16.mxu0 0
  %68 = vmatpush2.bf16.msra.mxu0 0
  %69 = vmatprep.subr.bf16.mxu0 0
  %70 = vmatpush2.bf16.msra.mxu0 0
  %71 = vmatprep.subr.bf16.mxu0 0
  %72 = vmatpush2.bf16.msra.mxu0 0
  %73 = vmatprep.subr.bf16.mxu0 0
  %74 = vmatpush2.bf16.msra.mxu0 0
  %75 = vmatprep.mubr.bf16.mxu0 0
  %76 = vmatmul.mubr.bf16.gmra.mxu0 %v41
  %v77 = vpop.f32.mrf.mxu0
  %v78 = vadd.f32 %v25, %v77
  %v79 = vpop.f32.mrf.mxu0
  %v80 = vpop.f32.mrf.mxu0
  %v81 = vpop.f32.mrf.mxu0
  %82 = vdwg.mxu0
  %83 = vst [vmem:[%s3] sm:$0xff] %v78
  // Predicated region
  $region14: #{_lambda_.33} parent=0 // pred_check
    _
  $region15: #{_lambda_.33} parent=0 // pred_check_branch
    %85 = sbr.rel (0) target = $region17
  $region16: #{_lambda_.33} parent=0 // pred_region
    _
  $region17: #{_lambda_.33} parent=0 // pred_fallthru
    _
  // Predicated region
  $region18: #{_lambda_.33} parent=0 // pred_check
    _
  $region19: #{_lambda_.33} parent=0 // pred_check_branch
    %87 = sbr.rel (0) target = $region21
  $region20: #{_lambda_.33} parent=0 // pred_region
    _
  $region21: #{_lambda_.33} parent=0 // pred_fallthru
    _

</llo_original>
